<compile_context>
chip_gen: v7x
topology: tpu7x:2x2x1
jax: 0.10.0
libtpu: 0.0.40
codegen_flags: <defaults>
</compile_context>

<pallas_src>
import math

import jax
import jax.numpy as jnp
from jax import lax
from jax.experimental import pallas as pl
from jax.experimental.pallas import tpu as pltpu


def _mha_kernel(n_heads, d_head, block_b, n_q, n_kv, d):
    """Per-grid-step kernel: `block_b` batch elements, all heads (unrolled)."""

    def kernel(xq_ref, xkv_ref, wq_ref, wkv_ref, wo_ref, b_ref, out_ref):
        # ---- fused projections over the whole batch block --------------------
        xq = xq_ref[...].reshape(block_b * n_q, d)      # (block_b*Nq, d)
        xkv = xkv_ref[...].reshape(block_b * n_kv, d)   # (block_b*Nkv, d)

        wq = wq_ref[...]           # (d, d)   pre-scaled by 1/sqrt(d_head)
        wkv = wkv_ref[...]         # (d, 2d)  [W_k^T | W_v^T]
        wo = wo_ref[...]           # (d, d)   W_out^T

        # packed biases: [b_q*scale | b_k | b_v | b_out]  (single (1, 4d) row)
        bq = b_ref[:, 0:d]
        bkv = b_ref[:, d:3 * d]
        bo = b_ref[:, 3 * d:4 * d]

        cdt = xq.dtype             # compute dtype (f32 or bf16); accum stays f32

        q = (jnp.dot(xq, wq, preferred_element_type=jnp.float32) + bq).astype(cdt)
        kv = (jnp.dot(xkv, wkv, preferred_element_type=jnp.float32) + bkv).astype(cdt)

        outs = []
        for bb in range(block_b):                        # static, unrolled
            q_b = q[bb * n_q:(bb + 1) * n_q, :]          # (Nq, d)   sublane-aligned
            kv_b = kv[bb * n_kv:(bb + 1) * n_kv, :]      # (Nkv, 2d) sublane-aligned

            head_acc = None
            for h in range(n_heads):                     # static, unrolled
                lo = h * d_head
                hi = lo + d_head
                q_h = q_b[:, lo:hi]                      # (Nq,  dh)
                k_h = kv_b[:, lo:hi]                     # (Nkv, dh)
                v_h = kv_b[:, d + lo:d + hi]             # (Nkv, dh)

                # scores: contract d_head of both operands (no explicit k_h.T)
                s = lax.dot_general(
                    q_h, k_h, (((1,), (1,)), ((), ())),
                    preferred_element_type=jnp.float32)  # (Nq, Nkv), f32
                s = s - jnp.max(s, axis=-1, keepdims=True)
                p = jnp.exp(s)
                p = p * pl.reciprocal(jnp.sum(p, axis=-1, keepdims=True),
                                      approx=True)
                ctx = jnp.dot(p.astype(cdt), v_h,
                              preferred_element_type=jnp.float32)   # (Nq, dh)

                # Head re-merge fused into W_out: accumulate partial products,
                # no concatenate of heads.
                part = jnp.dot(ctx.astype(wo.dtype), wo[lo:hi, :],
                               preferred_element_type=jnp.float32)  # (Nq, d)
                head_acc = part if head_acc is None else head_acc + part

            outs.append(head_acc + bo)

        out = outs[0] if block_b == 1 else jnp.concatenate(outs, axis=0)
        out_ref[...] = out.reshape(block_b, n_q, d).astype(out_ref.dtype)

    return kernel


def _choose_block_b(batch, max_block=8):
    """Biggest divisor of `batch` <= max_block that still leaves >= 2 grid steps
    (so both v7x TensorCores get work)."""
    if batch <= 1:
        return 1
    bb = max(1, min(max_block, batch // 2))
    while batch % bb:
        bb -= 1
    return bb


def multihead_attention(x_q, x_kv, params, n_heads, *, compute_dtype=None,
                        block_b=None):
    """x_q: [B, Nq, d], x_kv: [B, Nkv, d]; params: dict of weights/biases."""
    B, Nq, d = x_q.shape
    _, Nkv, _ = x_kv.shape
    assert n_heads > 1 and d % n_heads == 0
    d_head = d // n_heads
    scale = 1.0 / math.sqrt(d_head)

    cdt = compute_dtype if compute_dtype is not None else x_q.dtype
    if block_b is None:
        block_b = _choose_block_b(B)
    assert B % block_b == 0
    grid_b = B // block_b

    # Weight prep (all free, wrapper-side XLA work):
    #  - fold the 1/sqrt(d_head) scale into W_q / b_q,
    #  - pre-transpose to [d_in, d_out],
    #  - concatenate K and V weights into one [d, 2d] matrix,
    #  - pack all biases into a single (1, 4d) row.
    wq_t = (params["W_q_w"] * scale).T.astype(cdt)                       # (d, d)
    wkv_t = jnp.concatenate(
        [params["W_k_w"].T, params["W_v_w"].T], axis=1).astype(cdt)      # (d, 2d)
    wo_t = params["W_out_w"].T.astype(cdt)                               # (d, d)
    bias = jnp.concatenate(
        [params["W_q_b"] * scale, params["W_k_b"],
         params["W_v_b"], params["W_out_b"]]).reshape(1, 4 * d).astype(jnp.float32)

    xq = x_q.astype(cdt)
    xkv = x_kv.astype(cdt)

    out = pl.pallas_call(
        _mha_kernel(n_heads, d_head, block_b, Nq, Nkv, d),
        out_shape=jax.ShapeDtypeStruct((B, Nq, d), cdt),
        grid_spec=pltpu.PrefetchScalarGridSpec(
            num_scalar_prefetch=0,
            grid=(grid_b,),
            in_specs=[
                pl.BlockSpec((block_b, Nq, d), lambda b: (b, 0, 0)),    # x_q
                pl.BlockSpec((block_b, Nkv, d), lambda b: (b, 0, 0)),   # x_kv
                pl.BlockSpec((d, d), lambda b: (0, 0)),                 # W_q^T (scaled)
                pl.BlockSpec((d, 2 * d), lambda b: (0, 0)),             # [W_k^T|W_v^T]
                pl.BlockSpec((d, d), lambda b: (0, 0)),                 # W_out^T
                pl.BlockSpec((1, 4 * d), lambda b: (0, 0)),             # packed biases
            ],
            out_specs=pl.BlockSpec((block_b, Nq, d), lambda b: (b, 0, 0)),
        ),
        compiler_params=pltpu.CompilerParams(
            dimension_semantics=("parallel",)),
    )(xq, xkv, wq_t, wkv_t, wo_t, bias)
    return out


def init_params(key, d, n_heads):
    """Deterministic init mirroring the module's __init__ (xavier, gain=1/sqrt(2))."""
    ks = jax.random.split(key, 4)
    xav_bound = (1.0 / math.sqrt(2.0)) * math.sqrt(6.0 / (d + d))
    out_bound = 1.0 / math.sqrt(d)
    return {
        "W_q_w": jax.random.uniform(ks[0], (d, d), jnp.float32, -xav_bound, xav_bound),
        "W_k_w": jax.random.uniform(ks[1], (d, d), jnp.float32, -xav_bound, xav_bound),
        "W_v_w": jax.random.uniform(ks[2], (d, d), jnp.float32, -xav_bound, xav_bound),
        "W_out_w": jax.random.uniform(ks[3], (d, d), jnp.float32, -out_bound, out_bound),
        "W_q_b": jnp.zeros((d,), jnp.float32),
        "W_k_b": jnp.zeros((d,), jnp.float32),
        "W_v_b": jnp.zeros((d,), jnp.float32),
        "W_out_b": jnp.zeros((d,), jnp.float32),
    }


def _reference(x_q, x_kv, params, n_heads):
    """Pure-JAX reference of the PyTorch forward (no compression, no dropout)."""
    B, Nq, d = x_q.shape
    d_head = d // n_heads
    q = x_q @ params["W_q_w"].T + params["W_q_b"]
    k = x_kv @ params["W_k_w"].T + params["W_k_b"]
    v = x_kv @ params["W_v_w"].T + params["W_v_b"]

    def reshape(t):
        b, n, _ = t.shape
        return t.reshape(b, n, n_heads, d_head).transpose(0, 2, 1, 3).reshape(
            b * n_heads, n, d_head)

    q, k, v = reshape(q), reshape(k), reshape(v)
    attn = jax.nn.softmax(q @ k.transpose(0, 2, 1) / math.sqrt(d_head), axis=-1)
    x = attn @ v
    x = x.reshape(B, n_heads, Nq, d_head).transpose(0, 2, 1, 3).reshape(B, Nq, d)
    return x @ params["W_out_w"].T + params["W_out_b"]


if __name__ == "__main__":
    B, Nq, Nkv, d, n_heads = 2, 8, 8, 32, 4

    key = jax.random.PRNGKey(0)
    k_params, k_xq, k_xkv = jax.random.split(key, 3)
    params = init_params(k_params, d, n_heads)
    x_q = jax.random.normal(k_xq, (B, Nq, d), jnp.float32)
    x_kv = jax.random.normal(k_xkv, (B, Nkv, d), jnp.float32)

    ref = _reference(x_q, x_kv, params, n_heads)

    # f32 path: block_b=1 -> grid=(2,) so both v7x TensorCores get a step.
    out = multihead_attention(x_q, x_kv, params, n_heads)
    out = jax.block_until_ready(out)
    assert out.shape == (B, Nq, d)
    # approx reciprocal in the softmax slightly loosens the tolerance vs exact div.
    assert jnp.allclose(out, ref, atol=2e-3, rtol=2e-3), \
        f"f32 max abs err {jnp.max(jnp.abs(out - ref))}"

    # bf16 compute path (v6e/v7x MXU) with a multi-element batch block per step.
    out_bf16 = multihead_attention(x_q, x_kv, params, n_heads,
                                   compute_dtype=jnp.bfloat16, block_b=2)
    out_bf16 = jax.block_until_ready(out_bf16)
    assert jnp.allclose(out_bf16.astype(jnp.float32), ref, atol=5e-2, rtol=5e-2), \
        f"bf16 max abs err {jnp.max(jnp.abs(out_bf16.astype(jnp.float32) - ref))}"

    print("KERNEL_OK")
</pallas_src>

<mosaic_0001>
module attributes {stable_mosaic.version = 11 : i64} {
  func.func @kernel(%arg0: i32, %arg1: memref<1x8x32xf32, #tpu.memory_space<vmem>>, %arg2: memref<1x8x32xf32, #tpu.memory_space<vmem>>, %arg3: memref<32x32xf32, #tpu.memory_space<vmem>>, %arg4: memref<32x64xf32, #tpu.memory_space<vmem>>, %arg5: memref<32x32xf32, #tpu.memory_space<vmem>>, %arg6: memref<1x128xf32, #tpu.memory_space<vmem>>, %arg7: memref<1x8x32xf32, #tpu.memory_space<vmem>>) attributes {dimension_semantics = [#tpu.dimension_semantics<parallel>], iteration_bounds = array<i64: 2>, scalar_prefetch = 0 : i64, scratch_operands = 0 : i64, tpu.core_type = #tpu.core_type<tc>, window_params = [{transform_indices = @transform_0, window_bounds = array<i64: 1, 8, 32>}, {transform_indices = @transform_1, window_bounds = array<i64: 1, 8, 32>}, {pipeline_mode = #tpu.pipeline_mode<synchronous>, transform_indices = @transform_2, window_bounds = array<i64: 32, 32>}, {pipeline_mode = #tpu.pipeline_mode<synchronous>, transform_indices = @transform_3, window_bounds = array<i64: 32, 64>}, {pipeline_mode = #tpu.pipeline_mode<synchronous>, transform_indices = @transform_4, window_bounds = array<i64: 32, 32>}, {pipeline_mode = #tpu.pipeline_mode<synchronous>, transform_indices = @transform_5, window_bounds = array<i64: 1, 128>}, {transform_indices = @transform_6, window_bounds = array<i64: 1, 8, 32>}]} {
    %c0 = arith.constant 0 : index
    %c0_0 = arith.constant 0 : index
    %c0_1 = arith.constant 0 : index
    %0 = vector.load %arg1[%c0, %c0_0, %c0_1] : memref<1x8x32xf32, #tpu.memory_space<vmem>>, vector<1x8x32xf32>
    %1 = vector.shape_cast %0 : vector<1x8x32xf32> to vector<8x32xf32>
    %c0_2 = arith.constant 0 : index
    %c0_3 = arith.constant 0 : index
    %c0_4 = arith.constant 0 : index
    %2 = vector.load %arg2[%c0_2, %c0_3, %c0_4] : memref<1x8x32xf32, #tpu.memory_space<vmem>>, vector<1x8x32xf32>
    %3 = vector.shape_cast %2 : vector<1x8x32xf32> to vector<8x32xf32>
    %c0_5 = arith.constant 0 : index
    %c0_6 = arith.constant 0 : index
    %4 = vector.load %arg3[%c0_5, %c0_6] : memref<32x32xf32, #tpu.memory_space<vmem>>, vector<32x32xf32>
    %c0_7 = arith.constant 0 : index
    %c0_8 = arith.constant 0 : index
    %5 = vector.load %arg4[%c0_7, %c0_8] : memref<32x64xf32, #tpu.memory_space<vmem>>, vector<32x64xf32>
    %c0_9 = arith.constant 0 : index
    %c0_10 = arith.constant 0 : index
    %6 = vector.load %arg5[%c0_9, %c0_10] : memref<32x32xf32, #tpu.memory_space<vmem>>, vector<32x32xf32>
    %c0_11 = arith.constant 0 : index
    %c0_12 = arith.constant 0 : index
    %7 = vector.load %arg6[%c0_11, %c0_12] : memref<1x128xf32, #tpu.memory_space<vmem>>, vector<1x32xf32>
    %c0_13 = arith.constant 0 : index
    %c32 = arith.constant 32 : index
    %8 = vector.load %arg6[%c0_13, %c32] : memref<1x128xf32, #tpu.memory_space<vmem>>, vector<1x64xf32>
    %c0_14 = arith.constant 0 : index
    %c96 = arith.constant 96 : index
    %9 = vector.load %arg6[%c0_14, %c96] : memref<1x128xf32, #tpu.memory_space<vmem>>, vector<1x32xf32>
    %cst = arith.constant dense<0.000000e+00> : vector<8x32xf32>
    %10 = tpu.matmul %1, %4, %cst {dimension_numbers = #tpu.dot_dimension_numbers<[1], [0], [0], [1], [0, 0, 1, 1], [], []>} : vector<8x32xf32>, vector<32x32xf32>, vector<8x32xf32> -> vector<8x32xf32>
    %11 = vector.broadcast %7 : vector<1x32xf32> to vector<8x32xf32>
    %12 = arith.addf %10, %11 : vector<8x32xf32>
    %cst_15 = arith.constant dense<0.000000e+00> : vector<8x64xf32>
    %13 = tpu.matmul %3, %5, %cst_15 {dimension_numbers = #tpu.dot_dimension_numbers<[1], [0], [0], [1], [0, 0, 1, 1], [], []>} : vector<8x32xf32>, vector<32x64xf32>, vector<8x64xf32> -> vector<8x64xf32>
    %14 = vector.broadcast %8 : vector<1x64xf32> to vector<8x64xf32>
    %15 = arith.addf %13, %14 : vector<8x64xf32>
    %16 = vector.extract_strided_slice %12 {offsets = [0, 0], sizes = [8, 8], strides = [1, 1]} : vector<8x32xf32> to vector<8x8xf32>
    %17 = vector.extract_strided_slice %15 {offsets = [0, 0], sizes = [8, 8], strides = [1, 1]} : vector<8x64xf32> to vector<8x8xf32>
    %18 = vector.extract_strided_slice %15 {offsets = [0, 32], sizes = [8, 8], strides = [1, 1]} : vector<8x64xf32> to vector<8x8xf32>
    %cst_16 = arith.constant dense<0.000000e+00> : vector<8x8xf32>
    %19 = tpu.matmul %16, %17, %cst_16 {dimension_numbers = #tpu.dot_dimension_numbers<[1], [1], [0], [0], [0, 0, 1, 0], [], []>} : vector<8x8xf32>, vector<8x8xf32>, vector<8x8xf32> -> vector<8x8xf32>
    %cst_17 = arith.constant dense<0xFF800000> : vector<8xf32>
    %20 = vector.multi_reduction <maximumf>, %19, %cst_17 [1] : vector<8x8xf32> to vector<8xf32>
    %21 = vector.shape_cast %20 : vector<8xf32> to vector<8x1xf32>
    %22 = vector.broadcast %21 : vector<8x1xf32> to vector<8x8xf32>
    %23 = arith.subf %19, %22 : vector<8x8xf32>
    %24 = math.exp %23 : vector<8x8xf32>
    %cst_18 = arith.constant dense<0.000000e+00> : vector<8xf32>
    %25 = vector.multi_reduction <add>, %24, %cst_18 [1] : vector<8x8xf32> to vector<8xf32>
    %26 = vector.shape_cast %25 : vector<8xf32> to vector<8x1xf32>
    %27 = tpu.reciprocal %26 {approx = true} : vector<8x1xf32> -> vector<8x1xf32>
    %28 = vector.broadcast %27 : vector<8x1xf32> to vector<8x8xf32>
    %29 = arith.mulf %24, %28 : vector<8x8xf32>
    %cst_19 = arith.constant dense<0.000000e+00> : vector<8x8xf32>
    %30 = tpu.matmul %29, %18, %cst_19 {dimension_numbers = #tpu.dot_dimension_numbers<[1], [0], [0], [1], [0, 0, 1, 1], [], []>} : vector<8x8xf32>, vector<8x8xf32>, vector<8x8xf32> -> vector<8x8xf32>
    %31 = vector.extract_strided_slice %6 {offsets = [0, 0], sizes = [8, 32], strides = [1, 1]} : vector<32x32xf32> to vector<8x32xf32>
    %cst_20 = arith.constant dense<0.000000e+00> : vector<8x32xf32>
    %32 = tpu.matmul %30, %31, %cst_20 {dimension_numbers = #tpu.dot_dimension_numbers<[1], [0], [0], [1], [0, 0, 1, 1], [], []>} : vector<8x8xf32>, vector<8x32xf32>, vector<8x32xf32> -> vector<8x32xf32>
    %33 = vector.extract_strided_slice %12 {offsets = [0, 8], sizes = [8, 8], strides = [1, 1]} : vector<8x32xf32> to vector<8x8xf32>
    %34 = vector.extract_strided_slice %15 {offsets = [0, 8], sizes = [8, 8], strides = [1, 1]} : vector<8x64xf32> to vector<8x8xf32>
    %35 = vector.extract_strided_slice %15 {offsets = [0, 40], sizes = [8, 8], strides = [1, 1]} : vector<8x64xf32> to vector<8x8xf32>
    %cst_21 = arith.constant dense<0.000000e+00> : vector<8x8xf32>
    %36 = tpu.matmul %33, %34, %cst_21 {dimension_numbers = #tpu.dot_dimension_numbers<[1], [1], [0], [0], [0, 0, 1, 0], [], []>} : vector<8x8xf32>, vector<8x8xf32>, vector<8x8xf32> -> vector<8x8xf32>
    %cst_22 = arith.constant dense<0xFF800000> : vector<8xf32>
    %37 = vector.multi_reduction <maximumf>, %36, %cst_22 [1] : vector<8x8xf32> to vector<8xf32>
    %38 = vector.shape_cast %37 : vector<8xf32> to vector<8x1xf32>
    %39 = vector.broadcast %38 : vector<8x1xf32> to vector<8x8xf32>
    %40 = arith.subf %36, %39 : vector<8x8xf32>
    %41 = math.exp %40 : vector<8x8xf32>
    %cst_23 = arith.constant dense<0.000000e+00> : vector<8xf32>
    %42 = vector.multi_reduction <add>, %41, %cst_23 [1] : vector<8x8xf32> to vector<8xf32>
    %43 = vector.shape_cast %42 : vector<8xf32> to vector<8x1xf32>
    %44 = tpu.reciprocal %43 {approx = true} : vector<8x1xf32> -> vector<8x1xf32>
    %45 = vector.broadcast %44 : vector<8x1xf32> to vector<8x8xf32>
    %46 = arith.mulf %41, %45 : vector<8x8xf32>
    %cst_24 = arith.constant dense<0.000000e+00> : vector<8x8xf32>
    %47 = tpu.matmul %46, %35, %cst_24 {dimension_numbers = #tpu.dot_dimension_numbers<[1], [0], [0], [1], [0, 0, 1, 1], [], []>} : vector<8x8xf32>, vector<8x8xf32>, vector<8x8xf32> -> vector<8x8xf32>
    %48 = vector.extract_strided_slice %6 {offsets = [8, 0], sizes = [8, 32], strides = [1, 1]} : vector<32x32xf32> to vector<8x32xf32>
    %cst_25 = arith.constant dense<0.000000e+00> : vector<8x32xf32>
    %49 = tpu.matmul %47, %48, %cst_25 {dimension_numbers = #tpu.dot_dimension_numbers<[1], [0], [0], [1], [0, 0, 1, 1], [], []>} : vector<8x8xf32>, vector<8x32xf32>, vector<8x32xf32> -> vector<8x32xf32>
    %50 = arith.addf %32, %49 : vector<8x32xf32>
    %51 = vector.extract_strided_slice %12 {offsets = [0, 16], sizes = [8, 8], strides = [1, 1]} : vector<8x32xf32> to vector<8x8xf32>
    %52 = vector.extract_strided_slice %15 {offsets = [0, 16], sizes = [8, 8], strides = [1, 1]} : vector<8x64xf32> to vector<8x8xf32>
    %53 = vector.extract_strided_slice %15 {offsets = [0, 48], sizes = [8, 8], strides = [1, 1]} : vector<8x64xf32> to vector<8x8xf32>
    %cst_26 = arith.constant dense<0.000000e+00> : vector<8x8xf32>
    %54 = tpu.matmul %51, %52, %cst_26 {dimension_numbers = #tpu.dot_dimension_numbers<[1], [1], [0], [0], [0, 0, 1, 0], [], []>} : vector<8x8xf32>, vector<8x8xf32>, vector<8x8xf32> -> vector<8x8xf32>
    %cst_27 = arith.constant dense<0xFF800000> : vector<8xf32>
    %55 = vector.multi_reduction <maximumf>, %54, %cst_27 [1] : vector<8x8xf32> to vector<8xf32>
    %56 = vector.shape_cast %55 : vector<8xf32> to vector<8x1xf32>
    %57 = vector.broadcast %56 : vector<8x1xf32> to vector<8x8xf32>
    %58 = arith.subf %54, %57 : vector<8x8xf32>
    %59 = math.exp %58 : vector<8x8xf32>
    %cst_28 = arith.constant dense<0.000000e+00> : vector<8xf32>
    %60 = vector.multi_reduction <add>, %59, %cst_28 [1] : vector<8x8xf32> to vector<8xf32>
    %61 = vector.shape_cast %60 : vector<8xf32> to vector<8x1xf32>
    %62 = tpu.reciprocal %61 {approx = true} : vector<8x1xf32> -> vector<8x1xf32>
    %63 = vector.broadcast %62 : vector<8x1xf32> to vector<8x8xf32>
    %64 = arith.mulf %59, %63 : vector<8x8xf32>
    %cst_29 = arith.constant dense<0.000000e+00> : vector<8x8xf32>
    %65 = tpu.matmul %64, %53, %cst_29 {dimension_numbers = #tpu.dot_dimension_numbers<[1], [0], [0], [1], [0, 0, 1, 1], [], []>} : vector<8x8xf32>, vector<8x8xf32>, vector<8x8xf32> -> vector<8x8xf32>
    %66 = vector.extract_strided_slice %6 {offsets = [16, 0], sizes = [8, 32], strides = [1, 1]} : vector<32x32xf32> to vector<8x32xf32>
    %cst_30 = arith.constant dense<0.000000e+00> : vector<8x32xf32>
    %67 = tpu.matmul %65, %66, %cst_30 {dimension_numbers = #tpu.dot_dimension_numbers<[1], [0], [0], [1], [0, 0, 1, 1], [], []>} : vector<8x8xf32>, vector<8x32xf32>, vector<8x32xf32> -> vector<8x32xf32>
    %68 = arith.addf %50, %67 : vector<8x32xf32>
    %69 = vector.extract_strided_slice %12 {offsets = [0, 24], sizes = [8, 8], strides = [1, 1]} : vector<8x32xf32> to vector<8x8xf32>
    %70 = vector.extract_strided_slice %15 {offsets = [0, 24], sizes = [8, 8], strides = [1, 1]} : vector<8x64xf32> to vector<8x8xf32>
    %71 = vector.extract_strided_slice %15 {offsets = [0, 56], sizes = [8, 8], strides = [1, 1]} : vector<8x64xf32> to vector<8x8xf32>
    %cst_31 = arith.constant dense<0.000000e+00> : vector<8x8xf32>
    %72 = tpu.matmul %69, %70, %cst_31 {dimension_numbers = #tpu.dot_dimension_numbers<[1], [1], [0], [0], [0, 0, 1, 0], [], []>} : vector<8x8xf32>, vector<8x8xf32>, vector<8x8xf32> -> vector<8x8xf32>
    %cst_32 = arith.constant dense<0xFF800000> : vector<8xf32>
    %73 = vector.multi_reduction <maximumf>, %72, %cst_32 [1] : vector<8x8xf32> to vector<8xf32>
    %74 = vector.shape_cast %73 : vector<8xf32> to vector<8x1xf32>
    %75 = vector.broadcast %74 : vector<8x1xf32> to vector<8x8xf32>
    %76 = arith.subf %72, %75 : vector<8x8xf32>
    %77 = math.exp %76 : vector<8x8xf32>
    %cst_33 = arith.constant dense<0.000000e+00> : vector<8xf32>
    %78 = vector.multi_reduction <add>, %77, %cst_33 [1] : vector<8x8xf32> to vector<8xf32>
    %79 = vector.shape_cast %78 : vector<8xf32> to vector<8x1xf32>
    %80 = tpu.reciprocal %79 {approx = true} : vector<8x1xf32> -> vector<8x1xf32>
    %81 = vector.broadcast %80 : vector<8x1xf32> to vector<8x8xf32>
    %82 = arith.mulf %77, %81 : vector<8x8xf32>
    %cst_34 = arith.constant dense<0.000000e+00> : vector<8x8xf32>
    %83 = tpu.matmul %82, %71, %cst_34 {dimension_numbers = #tpu.dot_dimension_numbers<[1], [0], [0], [1], [0, 0, 1, 1], [], []>} : vector<8x8xf32>, vector<8x8xf32>, vector<8x8xf32> -> vector<8x8xf32>
    %84 = vector.extract_strided_slice %6 {offsets = [24, 0], sizes = [8, 32], strides = [1, 1]} : vector<32x32xf32> to vector<8x32xf32>
    %cst_35 = arith.constant dense<0.000000e+00> : vector<8x32xf32>
    %85 = tpu.matmul %83, %84, %cst_35 {dimension_numbers = #tpu.dot_dimension_numbers<[1], [0], [0], [1], [0, 0, 1, 1], [], []>} : vector<8x8xf32>, vector<8x32xf32>, vector<8x32xf32> -> vector<8x32xf32>
    %86 = arith.addf %68, %85 : vector<8x32xf32>
    %87 = vector.broadcast %9 : vector<1x32xf32> to vector<8x32xf32>
    %88 = arith.addf %86, %87 : vector<8x32xf32>
    %89 = vector.shape_cast %88 : vector<8x32xf32> to vector<1x8x32xf32>
    %c0_36 = arith.constant 0 : index
    %c0_37 = arith.constant 0 : index
    %c0_38 = arith.constant 0 : index
    %90 = vector.load %arg7[%c0_36, %c0_37, %c0_38] : memref<1x8x32xf32, #tpu.memory_space<vmem>>, vector<1x8x32xf32>
    tpu.vector_store %arg7[%c0_36, %c0_37, %c0_38], %89 {strides = array<i32>} : memref<1x8x32xf32, #tpu.memory_space<vmem>>, vector<1x8x32xf32>,
    return
  }
  func.func @transform_0(%arg0: i32) -> (i32, i32, i32) {
    %c0_i32 = arith.constant 0 : i32
    %c0_i32_0 = arith.constant 0 : i32
    %c0_i32_1 = arith.constant 0 : i32
    return %arg0, %c0_i32, %c0_i32_0 : i32, i32, i32
  }
  func.func @transform_1(%arg0: i32) -> (i32, i32, i32) {
    %c0_i32 = arith.constant 0 : i32
    %c0_i32_0 = arith.constant 0 : i32
    %c0_i32_1 = arith.constant 0 : i32
    return %arg0, %c0_i32, %c0_i32_0 : i32, i32, i32
  }
  func.func @transform_2(%arg0: i32) -> (i32, i32) {
    %c0_i32 = arith.constant 0 : i32
    %c0_i32_0 = arith.constant 0 : i32
    %c0_i32_1 = arith.constant 0 : i32
    return %c0_i32, %c0_i32_0 : i32, i32
  }
  func.func @transform_3(%arg0: i32) -> (i32, i32) {
    %c0_i32 = arith.constant 0 : i32
    %c0_i32_0 = arith.constant 0 : i32
    %c0_i32_1 = arith.constant 0 : i32
    return %c0_i32, %c0_i32_0 : i32, i32
  }
  func.func @transform_4(%arg0: i32) -> (i32, i32) {
    %c0_i32 = arith.constant 0 : i32
    %c0_i32_0 = arith.constant 0 : i32
    %c0_i32_1 = arith.constant 0 : i32
    return %c0_i32, %c0_i32_0 : i32, i32
  }
  func.func @transform_5(%arg0: i32) -> (i32, i32) {
    %c0_i32 = arith.constant 0 : i32
    %c0_i32_0 = arith.constant 0 : i32
    %c0_i32_1 = arith.constant 0 : i32
    return %c0_i32, %c0_i32_0 : i32, i32
  }
  func.func @transform_6(%arg0: i32) -> (i32, i32, i32) {
    %c0_i32 = arith.constant 0 : i32
    %c0_i32_0 = arith.constant 0 : i32
    %c0_i32_1 = arith.constant 0 : i32
    return %arg0, %c0_i32, %c0_i32_0 : i32, i32, i32
  }
}

</mosaic_0001>

<llo_original>
// kernel: tpu_custom_call.1
$region0: #{tpu_custom_call.1}
  #allocation0 [shape = 'u32[]', space=smem, size = 0x4, offset = 0x4, fixed_abs, tag = 'smem constant byte address 0x4 - core index']
  #allocation1 [shape = 'u32[144,128]{1,0:T(1,128)}', space=vmem, size = 0x12000, scoped, tag = 'internal scratch']
  %s0 = inlined_call_operand.hbm [shape: f32[2,8,32], index: 0, kind: input, shape index: {}]
  %s1 = inlined_call_operand.hbm [shape: f32[2,8,32], index: 1, kind: input, shape index: {}]
  %s2 = inlined_call_operand.hbm [shape: f32[32,32], index: 2, kind: input, shape index: {}]
  %s3 = inlined_call_operand.hbm [shape: f32[32,64], index: 3, kind: input, shape index: {}]
  %s4 = inlined_call_operand.hbm [shape: f32[32,32], index: 4, kind: input, shape index: {}]
  %s5 = inlined_call_operand.vmem [shape: f32[1,128], index: 5, kind: input, shape index: {}]
  %s6 = inlined_call_operand.hbm [shape: f32[2,8,32], index: 6, kind: output, shape index: {}]
  %s7 = sld [smem:[#allocation0]]
  $region77: #{tpu_custom_call.1} parent=0
    _
  %s9 = ssub.s32 1, %s7
  %s10 = scalar_select 0, %s9, %s7
  $region1: #{tpu_custom_call.1} parent=0
    #allocation2 [shape = 'u8[8192]{0}', space=vmem, size = 0x2000, scoped, tag = 'input window, operand 0']
    #allocation3 [shape = 's32[2]{0}', space=sflag, size = 0x8, scoped, tag = 'scoped memory for tpu_custom_call.1']
    #allocation4 [shape = 's32[2]{0}', space=sflag, size = 0x8, scoped, tag = 'scoped memory for tpu_custom_call.1']
    #allocation5 [shape = 'u8[8192]{0}', space=vmem, size = 0x2000, scoped, tag = 'input window, operand 1']
    #allocation6 [shape = 's32[2]{0}', space=sflag, size = 0x8, scoped, tag = 'scoped memory for tpu_custom_call.1']
    #allocation7 [shape = 'u8[16384]{0}', space=vmem, size = 0x4000, scoped, tag = 'input window, operand 2, single buffered']
    #allocation8 [shape = 'u8[16384]{0}', space=vmem, size = 0x4000, scoped, tag = 'input window, operand 3, single buffered']
    #allocation9 [shape = 's32[1]{0}', space=sflag, size = 0x4, scoped, tag = 'scoped memory for tpu_custom_call.1']
    #allocation10 [shape = 'u8[16384]{0}', space=vmem, size = 0x4000, scoped, tag = 'input window, operand 4, single buffered']
    #allocation11 [shape = 'u8[8192]{0}', space=vmem, size = 0x2000, scoped, tag = 'output window, operand 0']
    %11 = vsyncpa [#allocation3], 0
    %s12 = scalar_lea.sflag [#allocation3], 1
    %13 = vsyncpa %s12, 0
    %14 = vsyncpa [#allocation6], 0
    %s15 = scalar_lea.sflag [#allocation6], 1
    %16 = vsyncpa %s15, 0
    %17 = vsyncpa [#allocation9], 0
    %18 = vsyncpa [#allocation4], 0
    %s19 = scalar_lea.sflag [#allocation4], 1
    %20 = vsyncpa %s19, 0
    loop: start=0, step=1, limit=4
    $region2: #{tpu_custom_call.1} parent=1 // loop_pre_header
      _
    $region3: #{tpu_custom_call.1} parent=1 // loop_header
      %s22 = sphi 0, %s26
      %p23 = scmp.ge.s32.totalorder %s22, 4
      %s32 = sphi 0, %s34
      %s35 = sphi 0, %s32
      %s36 = sphi 0, %s35
      %s52 = sphi 0, %s36
      %s58 = sphi 0, %s60
      %s61 = sphi 0, %s58
      %s62 = sphi 0, %s61
      %s78 = sphi 0, %s62
      %s82 = sphi 0, %s82
      %s84 = sphi 0, %s82
      %s85 = sphi 0, %s84
      %s99 = sphi 0, %s85
      %s103 = sphi 0, %s103
      %s105 = sphi 0, %s103
      %s106 = sphi 0, %s105
      %s120 = sphi 0, %s106
      %s124 = sphi 0, %s124
      %s126 = sphi 0, %s124
      %s127 = sphi 0, %s126
      %s141 = sphi 0, %s127
      %s145 = sphi 0, %s145
      %s147 = sphi 0, %s145
      %s148 = sphi 0, %s147
      %s162 = sphi 0, %s148
      %s168 = sphi 0, %s170
      %s171 = sphi 0, %s168
      %s172 = sphi 0, %s171
      %s188 = sphi 0, %s172
    $region4: #{tpu_custom_call.1} parent=1 // loop_header_branch
      %25 = sbr.rel (%p23) target = $region8
    $region5: #{tpu_custom_call.1} parent=1 // loop_body
      %s27 = ssub.s32 %s22, 1
      %s28 = ssub.s32 %s22, 2
      %s29 = sadd.s32 %s22, 1
      %s30 = ssub.s32 %s22, %s29
      %p31 = scmp.eq.s32.totalorder %s30, 0
      %s33 = sadd.s32 %s32, 1
      %s34 = scalar_select %p31, %s32, %s33
      %p37 = pneg %p31
      %p38 = scmp.eq.s32.totalorder %s22, 1
      %p39 = por %p37, %p38
      %p40 = scmp.ne.s32.totalorder %s32, %s35
      %p41 = scmp.eq.s32.totalorder %s22, 0
      %p42 = por %p40, %p41
      %p43 = scmp.ne.s32.totalorder %s32, %s35
      %p44 = scmp.eq.s32.totalorder %s27, 1
      %p45 = por %p43, %p44
      %p46 = scmp.ne.s32.totalorder %s35, %s36
      %p47 = scmp.eq.s32.totalorder %s27, 0
      %p48 = por %p46, %p47
      %p49 = scmp.ne.s32.totalorder %s35, %s36
      %p50 = scmp.eq.s32.totalorder %s28, 1
      %p51 = por %p49, %p50
      %p53 = scmp.ne.s32.totalorder %s36, %s52
      %p54 = scmp.eq.s32.totalorder %s28, 0
      %p55 = por %p53, %p54
      %s56 = ssub.s32 %s22, %s29
      %p57 = scmp.eq.s32.totalorder %s56, 0
      %s59 = sadd.s32 %s58, 1
      %s60 = scalar_select %p57, %s58, %s59
      %p63 = pneg %p57
      %p64 = scmp.eq.s32.totalorder %s22, 1
      %p65 = por %p63, %p64
      %p66 = scmp.ne.s32.totalorder %s58, %s61
      %p67 = scmp.eq.s32.totalorder %s22, 0
      %p68 = por %p66, %p67
      %p69 = scmp.ne.s32.totalorder %s58, %s61
      %p70 = scmp.eq.s32.totalorder %s27, 1
      %p71 = por %p69, %p70
      %p72 = scmp.ne.s32.totalorder %s61, %s62
      %p73 = scmp.eq.s32.totalorder %s27, 0
      %p74 = por %p72, %p73
      %p75 = scmp.ne.s32.totalorder %s61, %s62
      %p76 = scmp.eq.s32.totalorder %s28, 1
      %p77 = por %p75, %p76
      %p79 = scmp.ne.s32.totalorder %s62, %s78
      %p80 = scmp.eq.s32.totalorder %s28, 0
      %p81 = por %p79, %p80
      %s83 = sadd.s32 %s82, 1
      %p86 = scmp.eq.s32.totalorder %s22, 1
      %p87 = scmp.ne.s32.totalorder %s82, %s84
      %p88 = scmp.eq.s32.totalorder %s22, 0
      %p89 = por %p87, %p88
      %p90 = scmp.ne.s32.totalorder %s82, %s84
      %p91 = scmp.eq.s32.totalorder %s27, 1
      %p92 = por %p90, %p91
      %p93 = scmp.ne.s32.totalorder %s84, %s85
      %p94 = scmp.eq.s32.totalorder %s27, 0
      %p95 = por %p93, %p94
      %p96 = scmp.ne.s32.totalorder %s84, %s85
      %p97 = scmp.eq.s32.totalorder %s28, 1
      %p98 = por %p96, %p97
      %p100 = scmp.ne.s32.totalorder %s85, %s99
      %p101 = scmp.eq.s32.totalorder %s28, 0
      %p102 = por %p100, %p101
      %s104 = sadd.s32 %s103, 1
      %p107 = scmp.eq.s32.totalorder %s22, 1
      %p108 = scmp.ne.s32.totalorder %s103, %s105
      %p109 = scmp.eq.s32.totalorder %s22, 0
      %p110 = por %p108, %p109
      %p111 = scmp.ne.s32.totalorder %s103, %s105
      %p112 = scmp.eq.s32.totalorder %s27, 1
      %p113 = por %p111, %p112
      %p114 = scmp.ne.s32.totalorder %s105, %s106
      %p115 = scmp.eq.s32.totalorder %s27, 0
      %p116 = por %p114, %p115
      %p117 = scmp.ne.s32.totalorder %s105, %s106
      %p118 = scmp.eq.s32.totalorder %s28, 1
      %p119 = por %p117, %p118
      %p121 = scmp.ne.s32.totalorder %s106, %s120
      %p122 = scmp.eq.s32.totalorder %s28, 0
      %p123 = por %p121, %p122
      %s125 = sadd.s32 %s124, 1
      %p128 = scmp.eq.s32.totalorder %s22, 1
      %p129 = scmp.ne.s32.totalorder %s124, %s126
      %p130 = scmp.eq.s32.totalorder %s22, 0
      %p131 = por %p129, %p130
      %p132 = scmp.ne.s32.totalorder %s124, %s126
      %p133 = scmp.eq.s32.totalorder %s27, 1
      %p134 = por %p132, %p133
      %p135 = scmp.ne.s32.totalorder %s126, %s127
      %p136 = scmp.eq.s32.totalorder %s27, 0
      %p137 = por %p135, %p136
      %p138 = scmp.ne.s32.totalorder %s126, %s127
      %p139 = scmp.eq.s32.totalorder %s28, 1
      %p140 = por %p138, %p139
      %p142 = scmp.ne.s32.totalorder %s127, %s141
      %p143 = scmp.eq.s32.totalorder %s28, 0
      %p144 = por %p142, %p143
      %s146 = sadd.s32 %s145, 1
      %p149 = scmp.eq.s32.totalorder %s22, 1
      %p150 = scmp.ne.s32.totalorder %s145, %s147
      %p151 = scmp.eq.s32.totalorder %s22, 0
      %p152 = por %p150, %p151
      %p153 = scmp.ne.s32.totalorder %s145, %s147
      %p154 = scmp.eq.s32.totalorder %s27, 1
      %p155 = por %p153, %p154
      %p156 = scmp.ne.s32.totalorder %s147, %s148
      %p157 = scmp.eq.s32.totalorder %s27, 0
      %p158 = por %p156, %p157
      %p159 = scmp.ne.s32.totalorder %s147, %s148
      %p160 = scmp.eq.s32.totalorder %s28, 1
      %p161 = por %p159, %p160
      %p163 = scmp.ne.s32.totalorder %s148, %s162
      %p164 = scmp.eq.s32.totalorder %s28, 0
      %p165 = por %p163, %p164
      %s166 = ssub.s32 %s22, %s29
      %p167 = scmp.eq.s32.totalorder %s166, 0
      %s169 = sadd.s32 %s168, 1
      %s170 = scalar_select %p167, %s168, %s169
      %p173 = pneg %p167
      %p174 = scmp.eq.s32.totalorder %s22, 1
      %p175 = por %p173, %p174
      %p176 = scmp.ne.s32.totalorder %s168, %s171
      %p177 = scmp.eq.s32.totalorder %s22, 0
      %p178 = por %p176, %p177
      %p179 = scmp.ne.s32.totalorder %s168, %s171
      %p180 = scmp.eq.s32.totalorder %s27, 1
      %p181 = por %p179, %p180
      %p182 = scmp.ne.s32.totalorder %s171, %s172
      %p183 = scmp.eq.s32.totalorder %s27, 0
      %p184 = por %p182, %p183
      %p185 = scmp.ne.s32.totalorder %s171, %s172
      %p186 = scmp.eq.s32.totalorder %s28, 1
      %p187 = por %p185, %p186
      %p189 = scmp.ne.s32.totalorder %s172, %s188
      %p190 = scmp.eq.s32.totalorder %s28, 0
      %p191 = por %p189, %p190
      %p192 = scmp.le.s32.totalorder 1, %s22
      %p193 = scmp.lt.s32.totalorder %s22, 3
      %p194 = pnand %p192, %p193
      %p195 = pneg %p194
      // Predicated region
      $region9: #{tpu_custom_call.1} parent=5 // pred_check
        _
      $region10: #{tpu_custom_call.1} parent=5 // pred_check_branch
        %197 = sbr.rel (%p194) target = $region12
      $region11: #{tpu_custom_call.1} parent=5 // pred_region
        %s198 = ssub.s32 %s22, 1
        // Predicated region
        $region13: #{tpu_custom_call.1} parent=11 // pred_check
          %p199 = pneg %p95
        $region14: #{tpu_custom_call.1} parent=11 // pred_check_branch
          %201 = sbr.rel (%p199) target = $region16
        $region15: #{tpu_custom_call.1} parent=11 // pred_region
          %s203 = ssub.s32 512, 512
          %204 = vsyncadd [#allocation6], %s203
          %s205 = sshll.u32 [#allocation7], 4
          %s206 = int_to_ptr.vmem [resolvable:$true] %s205
          %211 = dma.hbm_to_vmem [thread:$0]  %s2, 512, %s206, [#allocation6], 128, 128, 8
        $region16: #{tpu_custom_call.1} parent=11 // pred_fallthru
          _
        // Predicated region
        $region17: #{tpu_custom_call.1} parent=11 // pred_check
          %p212 = pneg %p116
        $region18: #{tpu_custom_call.1} parent=11 // pred_check_branch
          %214 = sbr.rel (%p212) target = $region20
        $region19: #{tpu_custom_call.1} parent=11 // pred_region
          %s216 = ssub.s32 512, 512
          %217 = vsyncadd [#allocation9], %s216
          %s218 = sshll.u32 [#allocation8], 4
          %s219 = int_to_ptr.vmem [resolvable:$true] %s218
          %224 = dma.hbm_to_vmem [thread:$0]  %s3, 512, %s219, [#allocation9], 128, 128, 8
        $region20: #{tpu_custom_call.1} parent=11 // pred_fallthru
          _
        // Predicated region
        $region21: #{tpu_custom_call.1} parent=11 // pred_check
          %p225 = pneg %p137
        $region22: #{tpu_custom_call.1} parent=11 // pred_check_branch
          %227 = sbr.rel (%p225) target = $region24
        $region23: #{tpu_custom_call.1} parent=11 // pred_region
          %s229 = ssub.s32 512, 512
          %230 = vsyncadd [#allocation9], %s229
          %s231 = sshll.u32 [#allocation10], 4
          %s232 = int_to_ptr.vmem [resolvable:$true] %s231
          %237 = dma.hbm_to_vmem [thread:$0]  %s4, 512, %s232, [#allocation9], 128, 128, 8
        $region24: #{tpu_custom_call.1} parent=11 // pred_fallthru
          _
        // Predicated region
        $region25: #{tpu_custom_call.1} parent=11 // pred_check
          %p238 = pneg %p158
        $region26: #{tpu_custom_call.1} parent=11 // pred_check_branch
          %240 = sbr.rel (%p238) target = $region28
        $region27: #{tpu_custom_call.1} parent=11 // pred_region
          _
        $region28: #{tpu_custom_call.1} parent=11 // pred_fallthru
          _
      $region12: #{tpu_custom_call.1} parent=5 // pred_fallthru
        _
      %p241 = scmp.lt.s32.totalorder %s22, 2
      // Predicated region
      $region29: #{tpu_custom_call.1} parent=5 // pred_check
        %p242 = pneg %p241
      $region30: #{tpu_custom_call.1} parent=5 // pred_check_branch
        %244 = sbr.rel (%p242) target = $region32
      $region31: #{tpu_custom_call.1} parent=5 // pred_region
        // Predicated region
        $region33: #{tpu_custom_call.1} parent=31 // pred_check
          %p245 = pneg %p42
        $region34: #{tpu_custom_call.1} parent=31 // pred_check_branch
          %247 = sbr.rel (%p245) target = $region36
        $region35: #{tpu_custom_call.1} parent=31 // pred_region
          %s248 = sand.u32 %s32, 1
          %s249 = scalar_lea.sflag [#allocation3], %s248
          %s250 = sand.u32 %s32, 1
          %s251 = smul.addr %s250, 8
          %s252 = scalar_lea.vmem [#allocation2], %s251
          %s254 = ssub.s32 128, 128
          %255 = vsyncadd %s249, %s254
          %s256 = smul.addr %s22, 128
          %s257 = scalar_lea.hbm %s0, %s256
          %s259 = sshll.u32 %s252, 4
          %s260 = int_to_ptr.vmem [resolvable:$true] %s259
          %262 = dma.hbm_to_vmem [thread:$0]  %s257, 128, %s260, %s249
        $region36: #{tpu_custom_call.1} parent=31 // pred_fallthru
          _
        // Predicated region
        $region37: #{tpu_custom_call.1} parent=31 // pred_check
          %p263 = pneg %p68
        $region38: #{tpu_custom_call.1} parent=31 // pred_check_branch
          %265 = sbr.rel (%p263) target = $region40
        $region39: #{tpu_custom_call.1} parent=31 // pred_region
          %s266 = sand.u32 %s22, 1
          %s267 = scalar_lea.sflag [#allocation6], %s266
          %s268 = sand.u32 %s58, 1
          %s269 = smul.addr %s268, 8
          %s270 = scalar_lea.vmem [#allocation5], %s269
          %s272 = ssub.s32 128, 128
          %273 = vsyncadd %s267, %s272
          %s274 = smul.addr %s22, 128
          %s275 = scalar_lea.hbm %s1, %s274
          %s277 = sshll.u32 %s270, 4
          %s278 = int_to_ptr.vmem [resolvable:$true] %s277
          %280 = dma.hbm_to_vmem [thread:$0]  %s275, 128, %s278, %s267
        $region40: #{tpu_custom_call.1} parent=31 // pred_fallthru
          _
      $region32: #{tpu_custom_call.1} parent=5 // pred_fallthru
        _
      %p281 = scmp.le.s32.totalorder 1, %s22
      %p282 = scmp.lt.s32.totalorder %s22, 3
      %p283 = pnand %p281, %p282
      %p284 = pneg %p283
      // Predicated region
      $region41: #{tpu_custom_call.1} parent=5 // pred_check
        _
      $region42: #{tpu_custom_call.1} parent=5 // pred_check_branch
        %286 = sbr.rel (%p283) target = $region44
      $region43: #{tpu_custom_call.1} parent=5 // pred_region
        %s287 = ssub.s32 %s22, 1
        %s288 = sand.u32 %s35, 1
        %s289 = scalar_lea.sflag [#allocation3], %s288
        %s290 = sand.u32 %s35, 1
        %s291 = smul.addr %s290, 8
        %s292 = scalar_lea.vmem [#allocation2], %s291
        // Predicated region
        $region45: #{tpu_custom_call.1} parent=43 // pred_check
          %p293 = pneg %p48
        $region46: #{tpu_custom_call.1} parent=43 // pred_check_branch
          %295 = sbr.rel (%p293) target = $region48
        $region47: #{tpu_custom_call.1} parent=43 // pred_region
          %296 = dma.done %s289, 128
        $region48: #{tpu_custom_call.1} parent=43 // pred_fallthru
          _
        %s297 = sand.u32 %s27, 1
        %s298 = scalar_lea.sflag [#allocation6], %s297
        %s299 = sand.u32 %s61, 1
        %s300 = smul.addr %s299, 8
        %s301 = scalar_lea.vmem [#allocation5], %s300
        // Predicated region
        $region49: #{tpu_custom_call.1} parent=43 // pred_check
          %p302 = pneg %p74
        $region50: #{tpu_custom_call.1} parent=43 // pred_check_branch
          %304 = sbr.rel (%p302) target = $region52
        $region51: #{tpu_custom_call.1} parent=43 // pred_region
          %305 = dma.done %s298, 128
        $region52: #{tpu_custom_call.1} parent=43 // pred_fallthru
          _
        // Predicated region
        $region53: #{tpu_custom_call.1} parent=43 // pred_check
          %p306 = pneg %p95
        $region54: #{tpu_custom_call.1} parent=43 // pred_check_branch
          %308 = sbr.rel (%p306) target = $region56
        $region55: #{tpu_custom_call.1} parent=43 // pred_region
          %309 = dma.done [#allocation6], 512
        $region56: #{tpu_custom_call.1} parent=43 // pred_fallthru
          _
        // Predicated region
        $region57: #{tpu_custom_call.1} parent=43 // pred_check
          %p310 = pneg %p116
        $region58: #{tpu_custom_call.1} parent=43 // pred_check_branch
          %312 = sbr.rel (%p310) target = $region60
        $region59: #{tpu_custom_call.1} parent=43 // pred_region
          %313 = dma.done [#allocation9], 512
        $region60: #{tpu_custom_call.1} parent=43 // pred_fallthru
          _
        // Predicated region
        $region61: #{tpu_custom_call.1} parent=43 // pred_check
          %p314 = pneg %p137
        $region62: #{tpu_custom_call.1} parent=43 // pred_check_branch
          %316 = sbr.rel (%p314) target = $region64
        $region63: #{tpu_custom_call.1} parent=43 // pred_region
          %317 = dma.done [#allocation9], 512
        $region64: #{tpu_custom_call.1} parent=43 // pred_fallthru
          _
        %s318 = sand.u32 %s35, 1
        %s319 = scalar_lea.sflag [#allocation3], %s318
        %s320 = sand.u32 %s35, 1
        %s321 = smul.addr %s320, 8
        %s322 = scalar_lea.vmem [#allocation2], %s321
        %p323 = pneg %p48
        %p324 = pneg %p45
        %s325 = sand.u32 %s27, 1
        %s326 = scalar_lea.sflag [#allocation6], %s325
        %s327 = sand.u32 %s61, 1
        %s328 = smul.addr %s327, 8
        %s329 = scalar_lea.vmem [#allocation5], %s328
        %p330 = pneg %p74
        %p331 = pneg %p71
        %p332 = pneg %p95
        %p333 = pneg %p92
        %p334 = pneg %p116
        %p335 = pneg %p113
        %p336 = pneg %p137
        %p337 = pneg %p134
        %p338 = pneg %p158
        %p339 = pneg %p155
        %p340 = pneg %p184
        %p341 = pneg %p181
        %s342 = sand.u32 %s171, 1
        %s343 = scalar_lea.sflag [#allocation4], %s342
        %s344 = sand.u32 %s171, 1
        %s345 = smul.addr %s344, 8
        %s346 = scalar_lea.vmem [#allocation11], %s345
        %v347 = vld [vmem:[%s292] sm:$0xff]
        %v348 = vld [vmem:[%s301] sm:$0xff]
        %v349 = vld [vmem:[#allocation7] sm:$0xff]
        %v350 = vld [vmem:[#allocation7 + $0x8] sm:$0xff]
        %v351 = vld [vmem:[#allocation7 + $0x10] sm:$0xff]
        %v352 = vld [vmem:[#allocation7 + $0x18] sm:$0xff]
        %v353 = vld [vmem:[#allocation8] sm:$0xff]
        %v354 = vld [vmem:[#allocation8 + $0x8] sm:$0xff]
        %v355 = vld [vmem:[#allocation8 + $0x10] sm:$0xff]
        %v356 = vld [vmem:[#allocation8 + $0x18] sm:$0xff]
        %v357 = vld [vmem:[#allocation10] sm:$0xff]
        %v358 = vld [vmem:[#allocation10 + $0x8] sm:$0xff]
        %v359 = vld [vmem:[#allocation10 + $0x10] sm:$0xff]
        %v360 = vld [vmem:[#allocation10 + $0x18] sm:$0xff]
        %v361 = vld [vmem:[%s5] sm:$0x1]
        %v363 = vlaneseq
        %v364 = vshrl.u32 %v363, 7
        %v365 = vsub.s32 0, %v364
        %v366 = vrot.slane %v361, %v365
        %vm368 = vcmask 261120
        %v370 = vsel %vm368, %v347, 0
        %372 = vmatprep.subr.mxu0 0.0
        %373 = vmatpush1.msra.mxu0 %v349
        %374 = vmatprep.subr.mxu0 0.0
        %375 = vmatpush1.msra.mxu0 %v350
        %376 = vmatprep.subr.mxu0 0.0
        %377 = vmatpush1.msra.mxu0 %v351
        %378 = vmatprep.subr.mxu0 0.0
        %379 = vmatpush1.msra.mxu0 %v352
        %380 = vmatprep.subr.mxu0 0.0
        %381 = vmatpush1.msra.mxu0 0.0
        %382 = vmatprep.subr.mxu0 0.0
        %383 = vmatpush1.msra.mxu0 0.0
        %384 = vmatprep.subr.mxu0 0.0
        %385 = vmatpush1.msra.mxu0 0.0
        %386 = vmatprep.subr.mxu0 0.0
        %387 = vmatpush1.msra.mxu0 0.0
        %388 = vmatprep.subr.mxu0 0.0
        %389 = vmatpush1.msra.mxu0 0.0
        %390 = vmatprep.subr.mxu0 0.0
        %391 = vmatpush1.msra.mxu0 0.0
        %392 = vmatprep.subr.mxu0 0.0
        %393 = vmatpush1.msra.mxu0 0.0
        %394 = vmatprep.subr.mxu0 0.0
        %395 = vmatpush1.msra.mxu0 0.0
        %396 = vmatprep.subr.mxu0 0.0
        %397 = vmatpush1.msra.mxu0 0.0
        %398 = vmatprep.subr.mxu0 0.0
        %399 = vmatpush1.msra.mxu0 0.0
        %400 = vmatprep.subr.mxu0 0.0
        %401 = vmatpush1.msra.mxu0 0.0
        %402 = vmatprep.subr.mxu0 0.0
        %403 = vmatpush1.msra.mxu0 0.0
        %404 = vmatprep.subr.mxu0 0.0
        %405 = vmatpush1.msra.mxu0 0.0
        %406 = vmatprep.subr.mxu0 0.0
        %407 = vmatpush1.msra.mxu0 0.0
        %408 = vmatprep.subr.mxu0 0.0
        %409 = vmatpush1.msra.mxu0 0.0
        %410 = vmatprep.subr.mxu0 0.0
        %411 = vmatpush1.msra.mxu0 0.0
        %412 = vmatprep.subr.mxu0 0.0
        %413 = vmatpush1.msra.mxu0 0.0
        %414 = vmatprep.subr.mxu0 0.0
        %415 = vmatpush1.msra.mxu0 0.0
        %416 = vmatprep.subr.mxu0 0.0
        %417 = vmatpush1.msra.mxu0 0.0
        %418 = vmatprep.subr.mxu0 0.0
        %419 = vmatpush1.msra.mxu0 0.0
        %420 = vmatprep.subr.mxu0 0.0
        %421 = vmatpush1.msra.mxu0 0.0
        %422 = vmatprep.subr.mxu0 0.0
        %423 = vmatpush1.msra.mxu0 0.0
        %424 = vmatprep.subr.mxu0 0.0
        %425 = vmatpush1.msra.mxu0 0.0
        %426 = vmatprep.subr.mxu0 0.0
        %427 = vmatpush1.msra.mxu0 0.0
        %428 = vmatprep.subr.mxu0 0.0
        %429 = vmatpush1.msra.mxu0 0.0
        %430 = vmatprep.subr.mxu0 0.0
        %431 = vmatpush1.msra.mxu0 0.0
        %432 = vmatprep.subr.mxu0 0.0
        %433 = vmatpush1.msra.mxu0 0.0
        %434 = vmatprep.subr.mxu0 0.0
        %435 = vmatpush1.msra.mxu0 0.0
        %436 = vmatprep.mubr.f32.mxu0 0.0
        %437 = vmatmul.mubr.f32.gmra.mrb[0].mxu0 %v370
        %v438 = vpop.f32.mrb[0].mxu0
        %v439 = vadd.f32 %v366, %v438
        %v440 = vpop.f32.mrb[0].mxu0
        %441 = vdwg.mxu0
        %442 = vrot.lane.b32.xlu0 %v366, 96
        %v443 = vpop.permute.xlu0 %442
        %v446 = vsel %vm368, %v348, 0
        %448 = vmatprep.subr.mxu0 0.0
        %449 = vmatpush1.msra.mxu0 %v353
        %450 = vmatprep.subr.mxu0 0.0
        %451 = vmatpush1.msra.mxu0 %v354
        %452 = vmatprep.subr.mxu0 0.0
        %453 = vmatpush1.msra.mxu0 %v355
        %454 = vmatprep.subr.mxu0 0.0
        %455 = vmatpush1.msra.mxu0 %v356
        %456 = vmatprep.subr.mxu0 0.0
        %457 = vmatpush1.msra.mxu0 0.0
        %458 = vmatprep.subr.mxu0 0.0
        %459 = vmatpush1.msra.mxu0 0.0
        %460 = vmatprep.subr.mxu0 0.0
        %461 = vmatpush1.msra.mxu0 0.0
        %462 = vmatprep.subr.mxu0 0.0
        %463 = vmatpush1.msra.mxu0 0.0
        %464 = vmatprep.subr.mxu0 0.0
        %465 = vmatpush1.msra.mxu0 0.0
        %466 = vmatprep.subr.mxu0 0.0
        %467 = vmatpush1.msra.mxu0 0.0
        %468 = vmatprep.subr.mxu0 0.0
        %469 = vmatpush1.msra.mxu0 0.0
        %470 = vmatprep.subr.mxu0 0.0
        %471 = vmatpush1.msra.mxu0 0.0
        %472 = vmatprep.subr.mxu0 0.0
        %473 = vmatpush1.msra.mxu0 0.0
        %474 = vmatprep.subr.mxu0 0.0
        %475 = vmatpush1.msra.mxu0 0.0
        %476 = vmatprep.subr.mxu0 0.0
        %477 = vmatpush1.msra.mxu0 0.0
        %478 = vmatprep.subr.mxu0 0.0
        %479 = vmatpush1.msra.mxu0 0.0
        %480 = vmatprep.subr.mxu0 0.0
        %481 = vmatpush1.msra.mxu0 0.0
        %482 = vmatprep.subr.mxu0 0.0
        %483 = vmatpush1.msra.mxu0 0.0
        %484 = vmatprep.subr.mxu0 0.0
        %485 = vmatpush1.msra.mxu0 0.0
        %486 = vmatprep.subr.mxu0 0.0
        %487 = vmatpush1.msra.mxu0 0.0
        %488 = vmatprep.subr.mxu0 0.0
        %489 = vmatpush1.msra.mxu0 0.0
        %490 = vmatprep.subr.mxu0 0.0
        %491 = vmatpush1.msra.mxu0 0.0
        %492 = vmatprep.subr.mxu0 0.0
        %493 = vmatpush1.msra.mxu0 0.0
        %494 = vmatprep.subr.mxu0 0.0
        %495 = vmatpush1.msra.mxu0 0.0
        %496 = vmatprep.subr.mxu0 0.0
        %497 = vmatpush1.msra.mxu0 0.0
        %498 = vmatprep.subr.mxu0 0.0
        %499 = vmatpush1.msra.mxu0 0.0
        %500 = vmatprep.subr.mxu0 0.0
        %501 = vmatpush1.msra.mxu0 0.0
        %502 = vmatprep.subr.mxu0 0.0
        %503 = vmatpush1.msra.mxu0 0.0
        %504 = vmatprep.subr.mxu0 0.0
        %505 = vmatpush1.msra.mxu0 0.0
        %506 = vmatprep.subr.mxu0 0.0
        %507 = vmatpush1.msra.mxu0 0.0
        %508 = vmatprep.subr.mxu0 0.0
        %509 = vmatpush1.msra.mxu0 0.0
        %510 = vmatprep.subr.mxu0 0.0
        %511 = vmatpush1.msra.mxu0 0.0
        %512 = vmatprep.mubr.f32.mxu0 0.0
        %513 = vmatmul.mubr.f32.gmra.mrb[0].mxu0 %v446
        %v514 = vpop.f32.mrb[0].mxu0
        %v515 = vadd.f32 %v443, %v514
        %v516 = vpop.f32.mrb[0].mxu0
        %517 = vdwg.mxu0
        %vm518 = vcmask 64512
        %v520 = vsel %vm518, %v439, 0
        %v523 = vsel %vm518, %v515, 0
        %525 = vmatprep.subr.mxu0 0.0
        %526 = vmatpush1.xpose.msra.mxu0 %v523
        %527 = vmatprep.subr.mxu0 0.0
        %528 = vmatpush1.xpose.msra.mxu0 0.0
        %529 = vmatprep.subr.mxu0 0.0
        %530 = vmatpush1.xpose.msra.mxu0 0.0
        %531 = vmatprep.subr.mxu0 0.0
        %532 = vmatpush1.xpose.msra.mxu0 0.0
        %533 = vmatprep.subr.mxu0 0.0
        %534 = vmatpush1.xpose.msra.mxu0 0.0
        %535 = vmatprep.subr.mxu0 0.0
        %536 = vmatpush1.xpose.msra.mxu0 0.0
        %537 = vmatprep.subr.mxu0 0.0
        %538 = vmatpush1.xpose.msra.mxu0 0.0
        %539 = vmatprep.subr.mxu0 0.0
        %540 = vmatpush1.xpose.msra.mxu0 0.0
        %541 = vmatprep.subr.mxu0 0.0
        %542 = vmatpush1.xpose.msra.mxu0 0.0
        %543 = vmatprep.subr.mxu0 0.0
        %544 = vmatpush1.xpose.msra.mxu0 0.0
        %545 = vmatprep.subr.mxu0 0.0
        %546 = vmatpush1.xpose.msra.mxu0 0.0
        %547 = vmatprep.subr.mxu0 0.0
        %548 = vmatpush1.xpose.msra.mxu0 0.0
        %549 = vmatprep.subr.mxu0 0.0
        %550 = vmatpush1.xpose.msra.mxu0 0.0
        %551 = vmatprep.subr.mxu0 0.0
        %552 = vmatpush1.xpose.msra.mxu0 0.0
        %553 = vmatprep.subr.mxu0 0.0
        %554 = vmatpush1.xpose.msra.mxu0 0.0
        %555 = vmatprep.subr.mxu0 0.0
        %556 = vmatpush1.xpose.msra.mxu0 0.0
        %557 = vmatprep.subr.mxu0 0.0
        %558 = vmatpush1.xpose.msra.mxu0 0.0
        %559 = vmatprep.subr.mxu0 0.0
        %560 = vmatpush1.xpose.msra.mxu0 0.0
        %561 = vmatprep.subr.mxu0 0.0
        %562 = vmatpush1.xpose.msra.mxu0 0.0
        %563 = vmatprep.subr.mxu0 0.0
        %564 = vmatpush1.xpose.msra.mxu0 0.0
        %565 = vmatprep.subr.mxu0 0.0
        %566 = vmatpush1.xpose.msra.mxu0 0.0
        %567 = vmatprep.subr.mxu0 0.0
        %568 = vmatpush1.xpose.msra.mxu0 0.0
        %569 = vmatprep.subr.mxu0 0.0
        %570 = vmatpush1.xpose.msra.mxu0 0.0
        %571 = vmatprep.subr.mxu0 0.0
        %572 = vmatpush1.xpose.msra.mxu0 0.0
        %573 = vmatprep.subr.mxu0 0.0
        %574 = vmatpush1.xpose.msra.mxu0 0.0
        %575 = vmatprep.subr.mxu0 0.0
        %576 = vmatpush1.xpose.msra.mxu0 0.0
        %577 = vmatprep.subr.mxu0 0.0
        %578 = vmatpush1.xpose.msra.mxu0 0.0
        %579 = vmatprep.subr.mxu0 0.0
        %580 = vmatpush1.xpose.msra.mxu0 0.0
        %581 = vmatprep.subr.mxu0 0.0
        %582 = vmatpush1.xpose.msra.mxu0 0.0
        %583 = vmatprep.subr.mxu0 0.0
        %584 = vmatpush1.xpose.msra.mxu0 0.0
        %585 = vmatprep.subr.mxu0 0.0
        %586 = vmatpush1.xpose.msra.mxu0 0.0
        %587 = vmatprep.subr.mxu0 0.0
        %588 = vmatpush1.xpose.msra.mxu0 0.0
        %589 = vmatprep.mubr.f32.mxu0 0.0
        %590 = vmatmul.mubr.f32.gmra.mrb[0].mxu0 %v520
        %v591 = vpop.f32.mrb[0].mxu0
        %v592 = vadd.f32 0.0, %v591
        %v593 = vpop.f32.mrb[0].mxu0
        %594 = vdwg.mxu0
        %v595 = vsel %vm518, %v592, -inf
        %596 = vmax.xlane.f32.xlu0 %v595
        %v597 = vpop.xlane.xlu0 %596
        %v598 = vsub.f32 %v592, %v597
        %v599 = vmul.f32 %v598, 1.442695
        %v600 = vpow.pop %v599
        %v601 = vsel %vm518, %v600, 0.0
        %602 = vadd.xlane.f32.xlu0 %v601
        %v603 = vpop.xlane.xlu0 %602
        %v604 = vrcp.pop %v603
        %v605 = vmul.f32 %v600, %v604
        %606 = vrot.lane.b32.xlu0 %v515, 96
        %v607 = vpop.permute.xlu0 %606
        %v610 = vsel %vm518, %v605, 0
        %612 = vmatprep.subr.mxu0 0.0
        %613 = vmatpush1.msra.mxu0 %v607
        %614 = vmatprep.subr.mxu0 0.0
        %615 = vmatpush1.msra.mxu0 0.0
        %616 = vmatprep.subr.mxu0 0.0
        %617 = vmatpush1.msra.mxu0 0.0
        %618 = vmatprep.subr.mxu0 0.0
        %619 = vmatpush1.msra.mxu0 0.0
        %620 = vmatprep.subr.mxu0 0.0
        %621 = vmatpush1.msra.mxu0 0.0
        %622 = vmatprep.subr.mxu0 0.0
        %623 = vmatpush1.msra.mxu0 0.0
        %624 = vmatprep.subr.mxu0 0.0
        %625 = vmatpush1.msra.mxu0 0.0
        %626 = vmatprep.subr.mxu0 0.0
        %627 = vmatpush1.msra.mxu0 0.0
        %628 = vmatprep.subr.mxu0 0.0
        %629 = vmatpush1.msra.mxu0 0.0
        %630 = vmatprep.subr.mxu0 0.0
        %631 = vmatpush1.msra.mxu0 0.0
        %632 = vmatprep.subr.mxu0 0.0
        %633 = vmatpush1.msra.mxu0 0.0
        %634 = vmatprep.subr.mxu0 0.0
        %635 = vmatpush1.msra.mxu0 0.0
        %636 = vmatprep.subr.mxu0 0.0
        %637 = vmatpush1.msra.mxu0 0.0
        %638 = vmatprep.subr.mxu0 0.0
        %639 = vmatpush1.msra.mxu0 0.0
        %640 = vmatprep.subr.mxu0 0.0
        %641 = vmatpush1.msra.mxu0 0.0
        %642 = vmatprep.subr.mxu0 0.0
        %643 = vmatpush1.msra.mxu0 0.0
        %644 = vmatprep.subr.mxu0 0.0
        %645 = vmatpush1.msra.mxu0 0.0
        %646 = vmatprep.subr.mxu0 0.0
        %647 = vmatpush1.msra.mxu0 0.0
        %648 = vmatprep.subr.mxu0 0.0
        %649 = vmatpush1.msra.mxu0 0.0
        %650 = vmatprep.subr.mxu0 0.0
        %651 = vmatpush1.msra.mxu0 0.0
        %652 = vmatprep.subr.mxu0 0.0
        %653 = vmatpush1.msra.mxu0 0.0
        %654 = vmatprep.subr.mxu0 0.0
        %655 = vmatpush1.msra.mxu0 0.0
        %656 = vmatprep.subr.mxu0 0.0
        %657 = vmatpush1.msra.mxu0 0.0
        %658 = vmatprep.subr.mxu0 0.0
        %659 = vmatpush1.msra.mxu0 0.0
        %660 = vmatprep.subr.mxu0 0.0
        %661 = vmatpush1.msra.mxu0 0.0
        %662 = vmatprep.subr.mxu0 0.0
        %663 = vmatpush1.msra.mxu0 0.0
        %664 = vmatprep.subr.mxu0 0.0
        %665 = vmatpush1.msra.mxu0 0.0
        %666 = vmatprep.subr.mxu0 0.0
        %667 = vmatpush1.msra.mxu0 0.0
        %668 = vmatprep.subr.mxu0 0.0
        %669 = vmatpush1.msra.mxu0 0.0
        %670 = vmatprep.subr.mxu0 0.0
        %671 = vmatpush1.msra.mxu0 0.0
        %672 = vmatprep.subr.mxu0 0.0
        %673 = vmatpush1.msra.mxu0 0.0
        %674 = vmatprep.subr.mxu0 0.0
        %675 = vmatpush1.msra.mxu0 0.0
        %676 = vmatprep.mubr.f32.mxu0 0.0
        %677 = vmatmul.mubr.f32.gmra.mrb[0].mxu0 %v610
        %v678 = vpop.f32.mrb[0].mxu0
        %v679 = vadd.f32 0.0, %v678
        %v680 = vpop.f32.mrb[0].mxu0
        %681 = vdwg.mxu0
        %682 = vrot.lane.b32.xlu0 %v439, 120
        %v683 = vpop.permute.xlu0 %682
        %684 = vrot.lane.b32.xlu0 %v515, 120
        %v685 = vpop.permute.xlu0 %684
        %v686 = vsel %vm518, %v683, 0
        %v688 = vsel %vm518, %v685, 0
        %690 = vmatprep.subr.mxu0 0.0
        %691 = vmatpush1.xpose.msra.mxu0 %v688
        %692 = vmatprep.subr.mxu0 0.0
        %693 = vmatpush1.xpose.msra.mxu0 0.0
        %694 = vmatprep.subr.mxu0 0.0
        %695 = vmatpush1.xpose.msra.mxu0 0.0
        %696 = vmatprep.subr.mxu0 0.0
        %697 = vmatpush1.xpose.msra.mxu0 0.0
        %698 = vmatprep.subr.mxu0 0.0
        %699 = vmatpush1.xpose.msra.mxu0 0.0
        %700 = vmatprep.subr.mxu0 0.0
        %701 = vmatpush1.xpose.msra.mxu0 0.0
        %702 = vmatprep.subr.mxu0 0.0
        %703 = vmatpush1.xpose.msra.mxu0 0.0
        %704 = vmatprep.subr.mxu0 0.0
        %705 = vmatpush1.xpose.msra.mxu0 0.0
        %706 = vmatprep.subr.mxu0 0.0
        %707 = vmatpush1.xpose.msra.mxu0 0.0
        %708 = vmatprep.subr.mxu0 0.0
        %709 = vmatpush1.xpose.msra.mxu0 0.0
        %710 = vmatprep.subr.mxu0 0.0
        %711 = vmatpush1.xpose.msra.mxu0 0.0
        %712 = vmatprep.subr.mxu0 0.0
        %713 = vmatpush1.xpose.msra.mxu0 0.0
        %714 = vmatprep.subr.mxu0 0.0
        %715 = vmatpush1.xpose.msra.mxu0 0.0
        %716 = vmatprep.subr.mxu0 0.0
        %717 = vmatpush1.xpose.msra.mxu0 0.0
        %718 = vmatprep.subr.mxu0 0.0
        %719 = vmatpush1.xpose.msra.mxu0 0.0
        %720 = vmatprep.subr.mxu0 0.0
        %721 = vmatpush1.xpose.msra.mxu0 0.0
        %722 = vmatprep.subr.mxu0 0.0
        %723 = vmatpush1.xpose.msra.mxu0 0.0
        %724 = vmatprep.subr.mxu0 0.0
        %725 = vmatpush1.xpose.msra.mxu0 0.0
        %726 = vmatprep.subr.mxu0 0.0
        %727 = vmatpush1.xpose.msra.mxu0 0.0
        %728 = vmatprep.subr.mxu0 0.0
        %729 = vmatpush1.xpose.msra.mxu0 0.0
        %730 = vmatprep.subr.mxu0 0.0
        %731 = vmatpush1.xpose.msra.mxu0 0.0
        %732 = vmatprep.subr.mxu0 0.0
        %733 = vmatpush1.xpose.msra.mxu0 0.0
        %734 = vmatprep.subr.mxu0 0.0
        %735 = vmatpush1.xpose.msra.mxu0 0.0
        %736 = vmatprep.subr.mxu0 0.0
        %737 = vmatpush1.xpose.msra.mxu0 0.0
        %738 = vmatprep.subr.mxu0 0.0
        %739 = vmatpush1.xpose.msra.mxu0 0.0
        %740 = vmatprep.subr.mxu0 0.0
        %741 = vmatpush1.xpose.msra.mxu0 0.0
        %742 = vmatprep.subr.mxu0 0.0
        %743 = vmatpush1.xpose.msra.mxu0 0.0
        %744 = vmatprep.subr.mxu0 0.0
        %745 = vmatpush1.xpose.msra.mxu0 0.0
        %746 = vmatprep.subr.mxu0 0.0
        %747 = vmatpush1.xpose.msra.mxu0 0.0
        %748 = vmatprep.subr.mxu0 0.0
        %749 = vmatpush1.xpose.msra.mxu0 0.0
        %750 = vmatprep.subr.mxu0 0.0
        %751 = vmatpush1.xpose.msra.mxu0 0.0
        %752 = vmatprep.subr.mxu0 0.0
        %753 = vmatpush1.xpose.msra.mxu0 0.0
        %754 = vmatprep.mubr.f32.mxu0 0.0
        %755 = vmatmul.mubr.f32.gmra.mrb[0].mxu0 %v686
        %v756 = vpop.f32.mrb[0].mxu0
        %v757 = vadd.f32 0.0, %v756
        %v758 = vpop.f32.mrb[0].mxu0
        %759 = vdwg.mxu0
        %v760 = vsel %vm518, %v757, -inf
        %761 = vmax.xlane.f32.xlu0 %v760
        %v762 = vpop.xlane.xlu0 %761
        %v763 = vsub.f32 %v757, %v762
        %v764 = vmul.f32 %v763, 1.442695
        %v765 = vpow.pop %v764
        %v766 = vsel %vm518, %v765, 0.0
        %767 = vadd.xlane.f32.xlu0 %v766
        %v768 = vpop.xlane.xlu0 %767
        %v769 = vrcp.pop %v768
        %v770 = vmul.f32 %v765, %v769
        %771 = vrot.lane.b32.xlu0 %v515, 88
        %v772 = vpop.permute.xlu0 %771
        %v775 = vsel %vm518, %v770, 0
        %777 = vmatprep.subr.mxu0 0.0
        %778 = vmatpush1.msra.mxu0 %v772
        %779 = vmatprep.subr.mxu0 0.0
        %780 = vmatpush1.msra.mxu0 0.0
        %781 = vmatprep.subr.mxu0 0.0
        %782 = vmatpush1.msra.mxu0 0.0
        %783 = vmatprep.subr.mxu0 0.0
        %784 = vmatpush1.msra.mxu0 0.0
        %785 = vmatprep.subr.mxu0 0.0
        %786 = vmatpush1.msra.mxu0 0.0
        %787 = vmatprep.subr.mxu0 0.0
        %788 = vmatpush1.msra.mxu0 0.0
        %789 = vmatprep.subr.mxu0 0.0
        %790 = vmatpush1.msra.mxu0 0.0
        %791 = vmatprep.subr.mxu0 0.0
        %792 = vmatpush1.msra.mxu0 0.0
        %793 = vmatprep.subr.mxu0 0.0
        %794 = vmatpush1.msra.mxu0 0.0
        %795 = vmatprep.subr.mxu0 0.0
        %796 = vmatpush1.msra.mxu0 0.0
        %797 = vmatprep.subr.mxu0 0.0
        %798 = vmatpush1.msra.mxu0 0.0
        %799 = vmatprep.subr.mxu0 0.0
        %800 = vmatpush1.msra.mxu0 0.0
        %801 = vmatprep.subr.mxu0 0.0
        %802 = vmatpush1.msra.mxu0 0.0
        %803 = vmatprep.subr.mxu0 0.0
        %804 = vmatpush1.msra.mxu0 0.0
        %805 = vmatprep.subr.mxu0 0.0
        %806 = vmatpush1.msra.mxu0 0.0
        %807 = vmatprep.subr.mxu0 0.0
        %808 = vmatpush1.msra.mxu0 0.0
        %809 = vmatprep.subr.mxu0 0.0
        %810 = vmatpush1.msra.mxu0 0.0
        %811 = vmatprep.subr.mxu0 0.0
        %812 = vmatpush1.msra.mxu0 0.0
        %813 = vmatprep.subr.mxu0 0.0
        %814 = vmatpush1.msra.mxu0 0.0
        %815 = vmatprep.subr.mxu0 0.0
        %816 = vmatpush1.msra.mxu0 0.0
        %817 = vmatprep.subr.mxu0 0.0
        %818 = vmatpush1.msra.mxu0 0.0
        %819 = vmatprep.subr.mxu0 0.0
        %820 = vmatpush1.msra.mxu0 0.0
        %821 = vmatprep.subr.mxu0 0.0
        %822 = vmatpush1.msra.mxu0 0.0
        %823 = vmatprep.subr.mxu0 0.0
        %824 = vmatpush1.msra.mxu0 0.0
        %825 = vmatprep.subr.mxu0 0.0
        %826 = vmatpush1.msra.mxu0 0.0
        %827 = vmatprep.subr.mxu0 0.0
        %828 = vmatpush1.msra.mxu0 0.0
        %829 = vmatprep.subr.mxu0 0.0
        %830 = vmatpush1.msra.mxu0 0.0
        %831 = vmatprep.subr.mxu0 0.0
        %832 = vmatpush1.msra.mxu0 0.0
        %833 = vmatprep.subr.mxu0 0.0
        %834 = vmatpush1.msra.mxu0 0.0
        %835 = vmatprep.subr.mxu0 0.0
        %836 = vmatpush1.msra.mxu0 0.0
        %837 = vmatprep.subr.mxu0 0.0
        %838 = vmatpush1.msra.mxu0 0.0
        %839 = vmatprep.subr.mxu0 0.0
        %840 = vmatpush1.msra.mxu0 0.0
        %841 = vmatprep.mubr.f32.mxu0 0.0
        %842 = vmatmul.mubr.f32.gmra.mrb[0].mxu0 %v775
        %v843 = vpop.f32.mrb[0].mxu0
        %v844 = vadd.f32 0.0, %v843
        %v845 = vpop.f32.mrb[0].mxu0
        %846 = vdwg.mxu0
        %v848 = vsel %vm518, %v844, 0
        %850 = vmatprep.subr.mxu0 0.0
        %851 = vmatpush1.msra.mxu0 %v358
        %852 = vmatprep.subr.mxu0 0.0
        %853 = vmatpush1.msra.mxu0 0.0
        %854 = vmatprep.subr.mxu0 0.0
        %855 = vmatpush1.msra.mxu0 0.0
        %856 = vmatprep.subr.mxu0 0.0
        %857 = vmatpush1.msra.mxu0 0.0
        %858 = vmatprep.subr.mxu0 0.0
        %859 = vmatpush1.msra.mxu0 0.0
        %860 = vmatprep.subr.mxu0 0.0
        %861 = vmatpush1.msra.mxu0 0.0
        %862 = vmatprep.subr.mxu0 0.0
        %863 = vmatpush1.msra.mxu0 0.0
        %864 = vmatprep.subr.mxu0 0.0
        %865 = vmatpush1.msra.mxu0 0.0
        %866 = vmatprep.subr.mxu0 0.0
        %867 = vmatpush1.msra.mxu0 0.0
        %868 = vmatprep.subr.mxu0 0.0
        %869 = vmatpush1.msra.mxu0 0.0
        %870 = vmatprep.subr.mxu0 0.0
        %871 = vmatpush1.msra.mxu0 0.0
        %872 = vmatprep.subr.mxu0 0.0
        %873 = vmatpush1.msra.mxu0 0.0
        %874 = vmatprep.subr.mxu0 0.0
        %875 = vmatpush1.msra.mxu0 0.0
        %876 = vmatprep.subr.mxu0 0.0
        %877 = vmatpush1.msra.mxu0 0.0
        %878 = vmatprep.subr.mxu0 0.0
        %879 = vmatpush1.msra.mxu0 0.0
        %880 = vmatprep.subr.mxu0 0.0
        %881 = vmatpush1.msra.mxu0 0.0
        %882 = vmatprep.subr.mxu0 0.0
        %883 = vmatpush1.msra.mxu0 0.0
        %884 = vmatprep.subr.mxu0 0.0
        %885 = vmatpush1.msra.mxu0 0.0
        %886 = vmatprep.subr.mxu0 0.0
        %887 = vmatpush1.msra.mxu0 0.0
        %888 = vmatprep.subr.mxu0 0.0
        %889 = vmatpush1.msra.mxu0 0.0
        %890 = vmatprep.subr.mxu0 0.0
        %891 = vmatpush1.msra.mxu0 0.0
        %892 = vmatprep.subr.mxu0 0.0
        %893 = vmatpush1.msra.mxu0 0.0
        %894 = vmatprep.subr.mxu0 0.0
        %895 = vmatpush1.msra.mxu0 0.0
        %896 = vmatprep.subr.mxu0 0.0
        %897 = vmatpush1.msra.mxu0 0.0
        %898 = vmatprep.subr.mxu0 0.0
        %899 = vmatpush1.msra.mxu0 0.0
        %900 = vmatprep.subr.mxu0 0.0
        %901 = vmatpush1.msra.mxu0 0.0
        %902 = vmatprep.subr.mxu0 0.0
        %903 = vmatpush1.msra.mxu0 0.0
        %904 = vmatprep.subr.mxu0 0.0
        %905 = vmatpush1.msra.mxu0 0.0
        %906 = vmatprep.subr.mxu0 0.0
        %907 = vmatpush1.msra.mxu0 0.0
        %908 = vmatprep.subr.mxu0 0.0
        %909 = vmatpush1.msra.mxu0 0.0
        %910 = vmatprep.subr.mxu0 0.0
        %911 = vmatpush1.msra.mxu0 0.0
        %912 = vmatprep.subr.mxu0 0.0
        %913 = vmatpush1.msra.mxu0 0.0
        %914 = vmatprep.mubr.f32.mxu0 0.0
        %915 = vmatmul.mubr.f32.gmra.mrb[0].mxu0 %v848
        %v916 = vpop.f32.mrb[0].mxu0
        %v917 = vadd.f32 0.0, %v916
        %v918 = vpop.f32.mrb[0].mxu0
        %919 = vdwg.mxu0
        %v921 = vsel %vm518, %v679, 0
        %923 = vmatprep.subr.mxu0 0.0
        %924 = vmatpush1.msra.mxu0 %v357
        %925 = vmatprep.subr.mxu0 0.0
        %926 = vmatpush1.msra.mxu0 0.0
        %927 = vmatprep.subr.mxu0 0.0
        %928 = vmatpush1.msra.mxu0 0.0
        %929 = vmatprep.subr.mxu0 0.0
        %930 = vmatpush1.msra.mxu0 0.0
        %931 = vmatprep.subr.mxu0 0.0
        %932 = vmatpush1.msra.mxu0 0.0
        %933 = vmatprep.subr.mxu0 0.0
        %934 = vmatpush1.msra.mxu0 0.0
        %935 = vmatprep.subr.mxu0 0.0
        %936 = vmatpush1.msra.mxu0 0.0
        %937 = vmatprep.subr.mxu0 0.0
        %938 = vmatpush1.msra.mxu0 0.0
        %939 = vmatprep.subr.mxu0 0.0
        %940 = vmatpush1.msra.mxu0 0.0
        %941 = vmatprep.subr.mxu0 0.0
        %942 = vmatpush1.msra.mxu0 0.0
        %943 = vmatprep.subr.mxu0 0.0
        %944 = vmatpush1.msra.mxu0 0.0
        %945 = vmatprep.subr.mxu0 0.0
        %946 = vmatpush1.msra.mxu0 0.0
        %947 = vmatprep.subr.mxu0 0.0
        %948 = vmatpush1.msra.mxu0 0.0
        %949 = vmatprep.subr.mxu0 0.0
        %950 = vmatpush1.msra.mxu0 0.0
        %951 = vmatprep.subr.mxu0 0.0
        %952 = vmatpush1.msra.mxu0 0.0
        %953 = vmatprep.subr.mxu0 0.0
        %954 = vmatpush1.msra.mxu0 0.0
        %955 = vmatprep.subr.mxu0 0.0
        %956 = vmatpush1.msra.mxu0 0.0
        %957 = vmatprep.subr.mxu0 0.0
        %958 = vmatpush1.msra.mxu0 0.0
        %959 = vmatprep.subr.mxu0 0.0
        %960 = vmatpush1.msra.mxu0 0.0
        %961 = vmatprep.subr.mxu0 0.0
        %962 = vmatpush1.msra.mxu0 0.0
        %963 = vmatprep.subr.mxu0 0.0
        %964 = vmatpush1.msra.mxu0 0.0
        %965 = vmatprep.subr.mxu0 0.0
        %966 = vmatpush1.msra.mxu0 0.0
        %967 = vmatprep.subr.mxu0 0.0
        %968 = vmatpush1.msra.mxu0 0.0
        %969 = vmatprep.subr.mxu0 0.0
        %970 = vmatpush1.msra.mxu0 0.0
        %971 = vmatprep.subr.mxu0 0.0
        %972 = vmatpush1.msra.mxu0 0.0
        %973 = vmatprep.subr.mxu0 0.0
        %974 = vmatpush1.msra.mxu0 0.0
        %975 = vmatprep.subr.mxu0 0.0
        %976 = vmatpush1.msra.mxu0 0.0
        %977 = vmatprep.subr.mxu0 0.0
        %978 = vmatpush1.msra.mxu0 0.0
        %979 = vmatprep.subr.mxu0 0.0
        %980 = vmatpush1.msra.mxu0 0.0
        %981 = vmatprep.subr.mxu0 0.0
        %982 = vmatpush1.msra.mxu0 0.0
        %983 = vmatprep.subr.mxu0 0.0
        %984 = vmatpush1.msra.mxu0 0.0
        %985 = vmatprep.subr.mxu0 0.0
        %986 = vmatpush1.msra.mxu0 0.0
        %987 = vmatprep.mubr.f32.mxu0 0.0
        %988 = vmatmul.mubr.f32.gmra.mrb[0].mxu0 %v921
        %v989 = vpop.f32.mrb[0].mxu0
        %v990 = vadd.f32 %v917, %v989
        %v991 = vpop.f32.mrb[0].mxu0
        %992 = vdwg.mxu0
        %993 = vrot.lane.b32.xlu0 %v439, 112
        %v994 = vpop.permute.xlu0 %993
        %995 = vrot.lane.b32.xlu0 %v515, 112
        %v996 = vpop.permute.xlu0 %995
        %v997 = vsel %vm518, %v994, 0
        %v999 = vsel %vm518, %v996, 0
        %1001 = vmatprep.subr.mxu0 0.0
        %1002 = vmatpush1.xpose.msra.mxu0 %v999
        %1003 = vmatprep.subr.mxu0 0.0
        %1004 = vmatpush1.xpose.msra.mxu0 0.0
        %1005 = vmatprep.subr.mxu0 0.0
        %1006 = vmatpush1.xpose.msra.mxu0 0.0
        %1007 = vmatprep.subr.mxu0 0.0
        %1008 = vmatpush1.xpose.msra.mxu0 0.0
        %1009 = vmatprep.subr.mxu0 0.0
        %1010 = vmatpush1.xpose.msra.mxu0 0.0
        %1011 = vmatprep.subr.mxu0 0.0
        %1012 = vmatpush1.xpose.msra.mxu0 0.0
        %1013 = vmatprep.subr.mxu0 0.0
        %1014 = vmatpush1.xpose.msra.mxu0 0.0
        %1015 = vmatprep.subr.mxu0 0.0
        %1016 = vmatpush1.xpose.msra.mxu0 0.0
        %1017 = vmatprep.subr.mxu0 0.0
        %1018 = vmatpush1.xpose.msra.mxu0 0.0
        %1019 = vmatprep.subr.mxu0 0.0
        %1020 = vmatpush1.xpose.msra.mxu0 0.0
        %1021 = vmatprep.subr.mxu0 0.0
        %1022 = vmatpush1.xpose.msra.mxu0 0.0
        %1023 = vmatprep.subr.mxu0 0.0
        %1024 = vmatpush1.xpose.msra.mxu0 0.0
        %1025 = vmatprep.subr.mxu0 0.0
        %1026 = vmatpush1.xpose.msra.mxu0 0.0
        %1027 = vmatprep.subr.mxu0 0.0
        %1028 = vmatpush1.xpose.msra.mxu0 0.0
        %1029 = vmatprep.subr.mxu0 0.0
        %1030 = vmatpush1.xpose.msra.mxu0 0.0
        %1031 = vmatprep.subr.mxu0 0.0
        %1032 = vmatpush1.xpose.msra.mxu0 0.0
        %1033 = vmatprep.subr.mxu0 0.0
        %1034 = vmatpush1.xpose.msra.mxu0 0.0
        %1035 = vmatprep.subr.mxu0 0.0
        %1036 = vmatpush1.xpose.msra.mxu0 0.0
        %1037 = vmatprep.subr.mxu0 0.0
        %1038 = vmatpush1.xpose.msra.mxu0 0.0
        %1039 = vmatprep.subr.mxu0 0.0
        %1040 = vmatpush1.xpose.msra.mxu0 0.0
        %1041 = vmatprep.subr.mxu0 0.0
        %1042 = vmatpush1.xpose.msra.mxu0 0.0
        %1043 = vmatprep.subr.mxu0 0.0
        %1044 = vmatpush1.xpose.msra.mxu0 0.0
        %1045 = vmatprep.subr.mxu0 0.0
        %1046 = vmatpush1.xpose.msra.mxu0 0.0
        %1047 = vmatprep.subr.mxu0 0.0
        %1048 = vmatpush1.xpose.msra.mxu0 0.0
        %1049 = vmatprep.subr.mxu0 0.0
        %1050 = vmatpush1.xpose.msra.mxu0 0.0
        %1051 = vmatprep.subr.mxu0 0.0
        %1052 = vmatpush1.xpose.msra.mxu0 0.0
        %1053 = vmatprep.subr.mxu0 0.0
        %1054 = vmatpush1.xpose.msra.mxu0 0.0
        %1055 = vmatprep.subr.mxu0 0.0
        %1056 = vmatpush1.xpose.msra.mxu0 0.0
        %1057 = vmatprep.subr.mxu0 0.0
        %1058 = vmatpush1.xpose.msra.mxu0 0.0
        %1059 = vmatprep.subr.mxu0 0.0
        %1060 = vmatpush1.xpose.msra.mxu0 0.0
        %1061 = vmatprep.subr.mxu0 0.0
        %1062 = vmatpush1.xpose.msra.mxu0 0.0
        %1063 = vmatprep.subr.mxu0 0.0
        %1064 = vmatpush1.xpose.msra.mxu0 0.0
        %1065 = vmatprep.mubr.f32.mxu0 0.0
        %1066 = vmatmul.mubr.f32.gmra.mrb[0].mxu0 %v997
        %v1067 = vpop.f32.mrb[0].mxu0
        %v1068 = vadd.f32 0.0, %v1067
        %v1069 = vpop.f32.mrb[0].mxu0
        %1070 = vdwg.mxu0
        %v1071 = vsel %vm518, %v1068, -inf
        %1072 = vmax.xlane.f32.xlu0 %v1071
        %v1073 = vpop.xlane.xlu0 %1072
        %v1074 = vsub.f32 %v1068, %v1073
        %v1075 = vmul.f32 %v1074, 1.442695
        %v1076 = vpow.pop %v1075
        %v1077 = vsel %vm518, %v1076, 0.0
        %1078 = vadd.xlane.f32.xlu0 %v1077
        %v1079 = vpop.xlane.xlu0 %1078
        %v1080 = vrcp.pop %v1079
        %v1081 = vmul.f32 %v1076, %v1080
        %1082 = vrot.lane.b32.xlu0 %v515, 80
        %v1083 = vpop.permute.xlu0 %1082
        %v1086 = vsel %vm518, %v1081, 0
        %1088 = vmatprep.subr.mxu0 0.0
        %1089 = vmatpush1.msra.mxu0 %v1083
        %1090 = vmatprep.subr.mxu0 0.0
        %1091 = vmatpush1.msra.mxu0 0.0
        %1092 = vmatprep.subr.mxu0 0.0
        %1093 = vmatpush1.msra.mxu0 0.0
        %1094 = vmatprep.subr.mxu0 0.0
        %1095 = vmatpush1.msra.mxu0 0.0
        %1096 = vmatprep.subr.mxu0 0.0
        %1097 = vmatpush1.msra.mxu0 0.0
        %1098 = vmatprep.subr.mxu0 0.0
        %1099 = vmatpush1.msra.mxu0 0.0
        %1100 = vmatprep.subr.mxu0 0.0
        %1101 = vmatpush1.msra.mxu0 0.0
        %1102 = vmatprep.subr.mxu0 0.0
        %1103 = vmatpush1.msra.mxu0 0.0
        %1104 = vmatprep.subr.mxu0 0.0
        %1105 = vmatpush1.msra.mxu0 0.0
        %1106 = vmatprep.subr.mxu0 0.0
        %1107 = vmatpush1.msra.mxu0 0.0
        %1108 = vmatprep.subr.mxu0 0.0
        %1109 = vmatpush1.msra.mxu0 0.0
        %1110 = vmatprep.subr.mxu0 0.0
        %1111 = vmatpush1.msra.mxu0 0.0
        %1112 = vmatprep.subr.mxu0 0.0
        %1113 = vmatpush1.msra.mxu0 0.0
        %1114 = vmatprep.subr.mxu0 0.0
        %1115 = vmatpush1.msra.mxu0 0.0
        %1116 = vmatprep.subr.mxu0 0.0
        %1117 = vmatpush1.msra.mxu0 0.0
        %1118 = vmatprep.subr.mxu0 0.0
        %1119 = vmatpush1.msra.mxu0 0.0
        %1120 = vmatprep.subr.mxu0 0.0
        %1121 = vmatpush1.msra.mxu0 0.0
        %1122 = vmatprep.subr.mxu0 0.0
        %1123 = vmatpush1.msra.mxu0 0.0
        %1124 = vmatprep.subr.mxu0 0.0
        %1125 = vmatpush1.msra.mxu0 0.0
        %1126 = vmatprep.subr.mxu0 0.0
        %1127 = vmatpush1.msra.mxu0 0.0
        %1128 = vmatprep.subr.mxu0 0.0
        %1129 = vmatpush1.msra.mxu0 0.0
        %1130 = vmatprep.subr.mxu0 0.0
        %1131 = vmatpush1.msra.mxu0 0.0
        %1132 = vmatprep.subr.mxu0 0.0
        %1133 = vmatpush1.msra.mxu0 0.0
        %1134 = vmatprep.subr.mxu0 0.0
        %1135 = vmatpush1.msra.mxu0 0.0
        %1136 = vmatprep.subr.mxu0 0.0
        %1137 = vmatpush1.msra.mxu0 0.0
        %1138 = vmatprep.subr.mxu0 0.0
        %1139 = vmatpush1.msra.mxu0 0.0
        %1140 = vmatprep.subr.mxu0 0.0
        %1141 = vmatpush1.msra.mxu0 0.0
        %1142 = vmatprep.subr.mxu0 0.0
        %1143 = vmatpush1.msra.mxu0 0.0
        %1144 = vmatprep.subr.mxu0 0.0
        %1145 = vmatpush1.msra.mxu0 0.0
        %1146 = vmatprep.subr.mxu0 0.0
        %1147 = vmatpush1.msra.mxu0 0.0
        %1148 = vmatprep.subr.mxu0 0.0
        %1149 = vmatpush1.msra.mxu0 0.0
        %1150 = vmatprep.subr.mxu0 0.0
        %1151 = vmatpush1.msra.mxu0 0.0
        %1152 = vmatprep.mubr.f32.mxu0 0.0
        %1153 = vmatmul.mubr.f32.gmra.mrb[0].mxu0 %v1086
        %v1154 = vpop.f32.mrb[0].mxu0
        %v1155 = vadd.f32 0.0, %v1154
        %v1156 = vpop.f32.mrb[0].mxu0
        %1157 = vdwg.mxu0
        %v1159 = vsel %vm518, %v1155, 0
        %1161 = vmatprep.subr.mxu0 0.0
        %1162 = vmatpush1.msra.mxu0 %v359
        %1163 = vmatprep.subr.mxu0 0.0
        %1164 = vmatpush1.msra.mxu0 0.0
        %1165 = vmatprep.subr.mxu0 0.0
        %1166 = vmatpush1.msra.mxu0 0.0
        %1167 = vmatprep.subr.mxu0 0.0
        %1168 = vmatpush1.msra.mxu0 0.0
        %1169 = vmatprep.subr.mxu0 0.0
        %1170 = vmatpush1.msra.mxu0 0.0
        %1171 = vmatprep.subr.mxu0 0.0
        %1172 = vmatpush1.msra.mxu0 0.0
        %1173 = vmatprep.subr.mxu0 0.0
        %1174 = vmatpush1.msra.mxu0 0.0
        %1175 = vmatprep.subr.mxu0 0.0
        %1176 = vmatpush1.msra.mxu0 0.0
        %1177 = vmatprep.subr.mxu0 0.0
        %1178 = vmatpush1.msra.mxu0 0.0
        %1179 = vmatprep.subr.mxu0 0.0
        %1180 = vmatpush1.msra.mxu0 0.0
        %1181 = vmatprep.subr.mxu0 0.0
        %1182 = vmatpush1.msra.mxu0 0.0
        %1183 = vmatprep.subr.mxu0 0.0
        %1184 = vmatpush1.msra.mxu0 0.0
        %1185 = vmatprep.subr.mxu0 0.0
        %1186 = vmatpush1.msra.mxu0 0.0
        %1187 = vmatprep.subr.mxu0 0.0
        %1188 = vmatpush1.msra.mxu0 0.0
        %1189 = vmatprep.subr.mxu0 0.0
        %1190 = vmatpush1.msra.mxu0 0.0
        %1191 = vmatprep.subr.mxu0 0.0
        %1192 = vmatpush1.msra.mxu0 0.0
        %1193 = vmatprep.subr.mxu0 0.0
        %1194 = vmatpush1.msra.mxu0 0.0
        %1195 = vmatprep.subr.mxu0 0.0
        %1196 = vmatpush1.msra.mxu0 0.0
        %1197 = vmatprep.subr.mxu0 0.0
        %1198 = vmatpush1.msra.mxu0 0.0
        %1199 = vmatprep.subr.mxu0 0.0
        %1200 = vmatpush1.msra.mxu0 0.0
        %1201 = vmatprep.subr.mxu0 0.0
        %1202 = vmatpush1.msra.mxu0 0.0
        %1203 = vmatprep.subr.mxu0 0.0
        %1204 = vmatpush1.msra.mxu0 0.0
        %1205 = vmatprep.subr.mxu0 0.0
        %1206 = vmatpush1.msra.mxu0 0.0
        %1207 = vmatprep.subr.mxu0 0.0
        %1208 = vmatpush1.msra.mxu0 0.0
        %1209 = vmatprep.subr.mxu0 0.0
        %1210 = vmatpush1.msra.mxu0 0.0
        %1211 = vmatprep.subr.mxu0 0.0
        %1212 = vmatpush1.msra.mxu0 0.0
        %1213 = vmatprep.subr.mxu0 0.0
        %1214 = vmatpush1.msra.mxu0 0.0
        %1215 = vmatprep.subr.mxu0 0.0
        %1216 = vmatpush1.msra.mxu0 0.0
        %1217 = vmatprep.subr.mxu0 0.0
        %1218 = vmatpush1.msra.mxu0 0.0
        %1219 = vmatprep.subr.mxu0 0.0
        %1220 = vmatpush1.msra.mxu0 0.0
        %1221 = vmatprep.subr.mxu0 0.0
        %1222 = vmatpush1.msra.mxu0 0.0
        %1223 = vmatprep.subr.mxu0 0.0
        %1224 = vmatpush1.msra.mxu0 0.0
        %1225 = vmatprep.mubr.f32.mxu0 0.0
        %1226 = vmatmul.mubr.f32.gmra.mrb[0].mxu0 %v1159
        %v1227 = vpop.f32.mrb[0].mxu0
        %v1228 = vadd.f32 0.0, %v1227
        %v1229 = vpop.f32.mrb[0].mxu0
        %1230 = vdwg.mxu0
        %v1231 = vadd.f32 %v990, %v1228
        %1232 = vrot.lane.b32.xlu0 %v439, 104
        %v1233 = vpop.permute.xlu0 %1232
        %1234 = vrot.lane.b32.xlu0 %v515, 104
        %v1235 = vpop.permute.xlu0 %1234
        %v1236 = vsel %vm518, %v1233, 0
        %v1238 = vsel %vm518, %v1235, 0
        %1240 = vmatprep.subr.mxu0 0.0
        %1241 = vmatpush1.xpose.msra.mxu0 %v1238
        %1242 = vmatprep.subr.mxu0 0.0
        %1243 = vmatpush1.xpose.msra.mxu0 0.0
        %1244 = vmatprep.subr.mxu0 0.0
        %1245 = vmatpush1.xpose.msra.mxu0 0.0
        %1246 = vmatprep.subr.mxu0 0.0
        %1247 = vmatpush1.xpose.msra.mxu0 0.0
        %1248 = vmatprep.subr.mxu0 0.0
        %1249 = vmatpush1.xpose.msra.mxu0 0.0
        %1250 = vmatprep.subr.mxu0 0.0
        %1251 = vmatpush1.xpose.msra.mxu0 0.0
        %1252 = vmatprep.subr.mxu0 0.0
        %1253 = vmatpush1.xpose.msra.mxu0 0.0
        %1254 = vmatprep.subr.mxu0 0.0
        %1255 = vmatpush1.xpose.msra.mxu0 0.0
        %1256 = vmatprep.subr.mxu0 0.0
        %1257 = vmatpush1.xpose.msra.mxu0 0.0
        %1258 = vmatprep.subr.mxu0 0.0
        %1259 = vmatpush1.xpose.msra.mxu0 0.0
        %1260 = vmatprep.subr.mxu0 0.0
        %1261 = vmatpush1.xpose.msra.mxu0 0.0
        %1262 = vmatprep.subr.mxu0 0.0
        %1263 = vmatpush1.xpose.msra.mxu0 0.0
        %1264 = vmatprep.subr.mxu0 0.0
        %1265 = vmatpush1.xpose.msra.mxu0 0.0
        %1266 = vmatprep.subr.mxu0 0.0
        %1267 = vmatpush1.xpose.msra.mxu0 0.0
        %1268 = vmatprep.subr.mxu0 0.0
        %1269 = vmatpush1.xpose.msra.mxu0 0.0
        %1270 = vmatprep.subr.mxu0 0.0
        %1271 = vmatpush1.xpose.msra.mxu0 0.0
        %1272 = vmatprep.subr.mxu0 0.0
        %1273 = vmatpush1.xpose.msra.mxu0 0.0
        %1274 = vmatprep.subr.mxu0 0.0
        %1275 = vmatpush1.xpose.msra.mxu0 0.0
        %1276 = vmatprep.subr.mxu0 0.0
        %1277 = vmatpush1.xpose.msra.mxu0 0.0
        %1278 = vmatprep.subr.mxu0 0.0
        %1279 = vmatpush1.xpose.msra.mxu0 0.0
        %1280 = vmatprep.subr.mxu0 0.0
        %1281 = vmatpush1.xpose.msra.mxu0 0.0
        %1282 = vmatprep.subr.mxu0 0.0
        %1283 = vmatpush1.xpose.msra.mxu0 0.0
        %1284 = vmatprep.subr.mxu0 0.0
        %1285 = vmatpush1.xpose.msra.mxu0 0.0
        %1286 = vmatprep.subr.mxu0 0.0
        %1287 = vmatpush1.xpose.msra.mxu0 0.0
        %1288 = vmatprep.subr.mxu0 0.0
        %1289 = vmatpush1.xpose.msra.mxu0 0.0
        %1290 = vmatprep.subr.mxu0 0.0
        %1291 = vmatpush1.xpose.msra.mxu0 0.0
        %1292 = vmatprep.subr.mxu0 0.0
        %1293 = vmatpush1.xpose.msra.mxu0 0.0
        %1294 = vmatprep.subr.mxu0 0.0
        %1295 = vmatpush1.xpose.msra.mxu0 0.0
        %1296 = vmatprep.subr.mxu0 0.0
        %1297 = vmatpush1.xpose.msra.mxu0 0.0
        %1298 = vmatprep.subr.mxu0 0.0
        %1299 = vmatpush1.xpose.msra.mxu0 0.0
        %1300 = vmatprep.subr.mxu0 0.0
        %1301 = vmatpush1.xpose.msra.mxu0 0.0
        %1302 = vmatprep.subr.mxu0 0.0
        %1303 = vmatpush1.xpose.msra.mxu0 0.0
        %1304 = vmatprep.mubr.f32.mxu0 0.0
        %1305 = vmatmul.mubr.f32.gmra.mrb[0].mxu0 %v1236
        %v1306 = vpop.f32.mrb[0].mxu0
        %v1307 = vadd.f32 0.0, %v1306
        %v1308 = vpop.f32.mrb[0].mxu0
        %1309 = vdwg.mxu0
        %v1310 = vsel %vm518, %v1307, -inf
        %1311 = vmax.xlane.f32.xlu0 %v1310
        %v1312 = vpop.xlane.xlu0 %1311
        %v1313 = vsub.f32 %v1307, %v1312
        %v1314 = vmul.f32 %v1313, 1.442695
        %v1315 = vpow.pop %v1314
        %v1316 = vsel %vm518, %v1315, 0.0
        %1317 = vadd.xlane.f32.xlu0 %v1316
        %v1318 = vpop.xlane.xlu0 %1317
        %v1319 = vrcp.pop %v1318
        %v1320 = vmul.f32 %v1315, %v1319
        %1321 = vrot.lane.b32.xlu0 %v515, 72
        %v1322 = vpop.permute.xlu0 %1321
        %v1325 = vsel %vm518, %v1320, 0
        %1327 = vmatprep.subr.mxu0 0.0
        %1328 = vmatpush1.msra.mxu0 %v1322
        %1329 = vmatprep.subr.mxu0 0.0
        %1330 = vmatpush1.msra.mxu0 0.0
        %1331 = vmatprep.subr.mxu0 0.0
        %1332 = vmatpush1.msra.mxu0 0.0
        %1333 = vmatprep.subr.mxu0 0.0
        %1334 = vmatpush1.msra.mxu0 0.0
        %1335 = vmatprep.subr.mxu0 0.0
        %1336 = vmatpush1.msra.mxu0 0.0
        %1337 = vmatprep.subr.mxu0 0.0
        %1338 = vmatpush1.msra.mxu0 0.0
        %1339 = vmatprep.subr.mxu0 0.0
        %1340 = vmatpush1.msra.mxu0 0.0
        %1341 = vmatprep.subr.mxu0 0.0
        %1342 = vmatpush1.msra.mxu0 0.0
        %1343 = vmatprep.subr.mxu0 0.0
        %1344 = vmatpush1.msra.mxu0 0.0
        %1345 = vmatprep.subr.mxu0 0.0
        %1346 = vmatpush1.msra.mxu0 0.0
        %1347 = vmatprep.subr.mxu0 0.0
        %1348 = vmatpush1.msra.mxu0 0.0
        %1349 = vmatprep.subr.mxu0 0.0
        %1350 = vmatpush1.msra.mxu0 0.0
        %1351 = vmatprep.subr.mxu0 0.0
        %1352 = vmatpush1.msra.mxu0 0.0
        %1353 = vmatprep.subr.mxu0 0.0
        %1354 = vmatpush1.msra.mxu0 0.0
        %1355 = vmatprep.subr.mxu0 0.0
        %1356 = vmatpush1.msra.mxu0 0.0
        %1357 = vmatprep.subr.mxu0 0.0
        %1358 = vmatpush1.msra.mxu0 0.0
        %1359 = vmatprep.subr.mxu0 0.0
        %1360 = vmatpush1.msra.mxu0 0.0
        %1361 = vmatprep.subr.mxu0 0.0
        %1362 = vmatpush1.msra.mxu0 0.0
        %1363 = vmatprep.subr.mxu0 0.0
        %1364 = vmatpush1.msra.mxu0 0.0
        %1365 = vmatprep.subr.mxu0 0.0
        %1366 = vmatpush1.msra.mxu0 0.0
        %1367 = vmatprep.subr.mxu0 0.0
        %1368 = vmatpush1.msra.mxu0 0.0
        %1369 = vmatprep.subr.mxu0 0.0
        %1370 = vmatpush1.msra.mxu0 0.0
        %1371 = vmatprep.subr.mxu0 0.0
        %1372 = vmatpush1.msra.mxu0 0.0
        %1373 = vmatprep.subr.mxu0 0.0
        %1374 = vmatpush1.msra.mxu0 0.0
        %1375 = vmatprep.subr.mxu0 0.0
        %1376 = vmatpush1.msra.mxu0 0.0
        %1377 = vmatprep.subr.mxu0 0.0
        %1378 = vmatpush1.msra.mxu0 0.0
        %1379 = vmatprep.subr.mxu0 0.0
        %1380 = vmatpush1.msra.mxu0 0.0
        %1381 = vmatprep.subr.mxu0 0.0
        %1382 = vmatpush1.msra.mxu0 0.0
        %1383 = vmatprep.subr.mxu0 0.0
        %1384 = vmatpush1.msra.mxu0 0.0
        %1385 = vmatprep.subr.mxu0 0.0
        %1386 = vmatpush1.msra.mxu0 0.0
        %1387 = vmatprep.subr.mxu0 0.0
        %1388 = vmatpush1.msra.mxu0 0.0
        %1389 = vmatprep.subr.mxu0 0.0
        %1390 = vmatpush1.msra.mxu0 0.0
        %1391 = vmatprep.mubr.f32.mxu0 0.0
        %1392 = vmatmul.mubr.f32.gmra.mrb[0].mxu0 %v1325
        %v1393 = vpop.f32.mrb[0].mxu0
        %v1394 = vadd.f32 0.0, %v1393
        %v1395 = vpop.f32.mrb[0].mxu0
        %1396 = vdwg.mxu0
        %v1398 = vsel %vm518, %v1394, 0
        %1400 = vmatprep.subr.mxu0 0.0
        %1401 = vmatpush1.msra.mxu0 %v360
        %1402 = vmatprep.subr.mxu0 0.0
        %1403 = vmatpush1.msra.mxu0 0.0
        %1404 = vmatprep.subr.mxu0 0.0
        %1405 = vmatpush1.msra.mxu0 0.0
        %1406 = vmatprep.subr.mxu0 0.0
        %1407 = vmatpush1.msra.mxu0 0.0
        %1408 = vmatprep.subr.mxu0 0.0
        %1409 = vmatpush1.msra.mxu0 0.0
        %1410 = vmatprep.subr.mxu0 0.0
        %1411 = vmatpush1.msra.mxu0 0.0
        %1412 = vmatprep.subr.mxu0 0.0
        %1413 = vmatpush1.msra.mxu0 0.0
        %1414 = vmatprep.subr.mxu0 0.0
        %1415 = vmatpush1.msra.mxu0 0.0
        %1416 = vmatprep.subr.mxu0 0.0
        %1417 = vmatpush1.msra.mxu0 0.0
        %1418 = vmatprep.subr.mxu0 0.0
        %1419 = vmatpush1.msra.mxu0 0.0
        %1420 = vmatprep.subr.mxu0 0.0
        %1421 = vmatpush1.msra.mxu0 0.0
        %1422 = vmatprep.subr.mxu0 0.0
        %1423 = vmatpush1.msra.mxu0 0.0
        %1424 = vmatprep.subr.mxu0 0.0
        %1425 = vmatpush1.msra.mxu0 0.0
        %1426 = vmatprep.subr.mxu0 0.0
        %1427 = vmatpush1.msra.mxu0 0.0
        %1428 = vmatprep.subr.mxu0 0.0
        %1429 = vmatpush1.msra.mxu0 0.0
        %1430 = vmatprep.subr.mxu0 0.0
        %1431 = vmatpush1.msra.mxu0 0.0
        %1432 = vmatprep.subr.mxu0 0.0
        %1433 = vmatpush1.msra.mxu0 0.0
        %1434 = vmatprep.subr.mxu0 0.0
        %1435 = vmatpush1.msra.mxu0 0.0
        %1436 = vmatprep.subr.mxu0 0.0
        %1437 = vmatpush1.msra.mxu0 0.0
        %1438 = vmatprep.subr.mxu0 0.0
        %1439 = vmatpush1.msra.mxu0 0.0
        %1440 = vmatprep.subr.mxu0 0.0
        %1441 = vmatpush1.msra.mxu0 0.0
        %1442 = vmatprep.subr.mxu0 0.0
        %1443 = vmatpush1.msra.mxu0 0.0
        %1444 = vmatprep.subr.mxu0 0.0
        %1445 = vmatpush1.msra.mxu0 0.0
        %1446 = vmatprep.subr.mxu0 0.0
        %1447 = vmatpush1.msra.mxu0 0.0
        %1448 = vmatprep.subr.mxu0 0.0
        %1449 = vmatpush1.msra.mxu0 0.0
        %1450 = vmatprep.subr.mxu0 0.0
        %1451 = vmatpush1.msra.mxu0 0.0
        %1452 = vmatprep.subr.mxu0 0.0
        %1453 = vmatpush1.msra.mxu0 0.0
        %1454 = vmatprep.subr.mxu0 0.0
        %1455 = vmatpush1.msra.mxu0 0.0
        %1456 = vmatprep.subr.mxu0 0.0
        %1457 = vmatpush1.msra.mxu0 0.0
        %1458 = vmatprep.subr.mxu0 0.0
        %1459 = vmatpush1.msra.mxu0 0.0
        %1460 = vmatprep.subr.mxu0 0.0
        %1461 = vmatpush1.msra.mxu0 0.0
        %1462 = vmatprep.subr.mxu0 0.0
        %1463 = vmatpush1.msra.mxu0 0.0
        %1464 = vmatprep.mubr.f32.mxu0 0.0
        %1465 = vmatmul.mubr.f32.gmra.mrb[0].mxu0 %v1398
        %v1466 = vpop.f32.mrb[0].mxu0
        %v1467 = vadd.f32 0.0, %v1466
        %v1468 = vpop.f32.mrb[0].mxu0
        %1469 = vdwg.mxu0
        %v1470 = vadd.f32 %v1231, %v1467
        %1471 = vrot.lane.b32.xlu0 %v366, 32
        %v1472 = vpop.permute.xlu0 %1471
        %v1474 = vadd.f32 %v1470, %v1472
        %1475 = vst.msk [vmem:[%s346] sm:$0xff] %vm368, %v1474
        %s1476 = sand.u32 %s171, 1
        %s1477 = scalar_lea.sflag [#allocation4], %s1476
        %s1478 = sand.u32 %s171, 1
        %s1479 = smul.addr %s1478, 8
        %s1480 = scalar_lea.vmem [#allocation11], %s1479
        // Predicated region
        $region65: #{tpu_custom_call.1} parent=43 // pred_check
          %p1481 = pneg %p181
        $region66: #{tpu_custom_call.1} parent=43 // pred_check_branch
          %1483 = sbr.rel (%p1481) target = $region68
        $region67: #{tpu_custom_call.1} parent=43 // pred_region
          %s1485 = ssub.s32 128, 128
          %1486 = vsyncadd %s1477, %s1485
          %s1487 = smul.addr %s27, 128
          %s1488 = scalar_lea.hbm %s6, %s1487
          %s1490 = sshll.u32 %s1480, 4
          %s1491 = int_to_ptr.vmem [resolvable:$true] %s1490
          %1493 = dma.vmem_to_hbm [thread:$0]  %s1491, 128, %s1488, %s1477
        $region68: #{tpu_custom_call.1} parent=43 // pred_fallthru
          _
      $region44: #{tpu_custom_call.1} parent=5 // pred_fallthru
        _
      %p1494 = scmp.le.s32.totalorder 2, %s22
      // Predicated region
      $region69: #{tpu_custom_call.1} parent=5 // pred_check
        %p1495 = pneg %p1494
      $region70: #{tpu_custom_call.1} parent=5 // pred_check_branch
        %1497 = sbr.rel (%p1495) target = $region72
      $region71: #{tpu_custom_call.1} parent=5 // pred_region
        %s1498 = ssub.s32 %s22, 2
        // Predicated region
        $region73: #{tpu_custom_call.1} parent=71 // pred_check
          %p1499 = pneg %p187
        $region74: #{tpu_custom_call.1} parent=71 // pred_check_branch
          %1501 = sbr.rel (%p1499) target = $region76
        $region75: #{tpu_custom_call.1} parent=71 // pred_region
          %s1502 = sand.u32 %s172, 1
          %s1503 = scalar_lea.sflag [#allocation4], %s1502
          %s1504 = sand.u32 %s172, 1
          %s1505 = smul.addr %s1504, 8
          %s1506 = scalar_lea.vmem [#allocation11], %s1505
          %1507 = dma.done %s1503, 128
        $region76: #{tpu_custom_call.1} parent=71 // pred_fallthru
          _
      $region72: #{tpu_custom_call.1} parent=5 // pred_fallthru
        _
    $region6: #{tpu_custom_call.1} parent=1 // loop_footer
      %s26 = sadd.s32 1, %s22
    $region7: #{tpu_custom_call.1} parent=1 // loop_footer_branch
      %21 = sbr.rel target = $region3
    $region8: #{tpu_custom_call.1} parent=1 // loop_exit
      _
    %1508 = vsyncpa [#allocation3], 1
    %s1509 = scalar_lea.sflag [#allocation3], 1
    %1510 = vsyncpa %s1509, 1
    %1511 = vsyncpa [#allocation6], 1
    %s1512 = scalar_lea.sflag [#allocation6], 1
    %1513 = vsyncpa %s1512, 1
    %1514 = vsyncpa [#allocation9], 1
    %1515 = vsyncpa [#allocation4], 1
    %s1516 = scalar_lea.sflag [#allocation4], 1
    %1517 = vsyncpa %s1516, 1

</llo_original>
